<compile_context>
chip_gen: v7x
topology: tpu7x:2x2x1
jax: 0.10.0
libtpu: 0.0.40
codegen_flags: <defaults>
</compile_context>

<pallas_src>
import functools

import jax
import jax.numpy as jnp
from jax.experimental import pallas as pl
from jax.experimental.pallas import tpu as pltpu


def _round_up(x, m):
    return (x + m - 1) // m * m


def stack_dnn_kernel(d1_ref, d2_ref, cell_ref, comp_ref,
                     w1a_ref, w1b_ref, w1c_ref, b1_ref, s1_ref, t1_ref,
                     w2_ref, b2_ref, s2_ref, t2_ref,
                     w3t_ref, b3_ref,
                     out_ref):
    # ---- compress: weighted sum over the stack axis (VPU mul + sublane reduce) ----
    cell = cell_ref[...]                       # (TB, S, Dc)
    comp = comp_ref[...]                       # (1,  S, 1)
    cell_c = jnp.sum(cell * comp, axis=1)      # (TB, Dc)

    # ---- layer 1: feat @ W1 without materializing the concat ----
    h = jnp.dot(d1_ref[...], w1a_ref[...], preferred_element_type=jnp.float32)
    h = h + jnp.dot(d2_ref[...], w1b_ref[...], preferred_element_type=jnp.float32)
    h = h + jnp.dot(cell_c, w1c_ref[...], preferred_element_type=jnp.float32)
    h = h + b1_ref[...]
    h = jnp.maximum(h, 0.0)
    h = h * s1_ref[...] + t1_ref[...]          # folded eval-mode BatchNorm1d

    # ---- layer 2 ----
    h = jnp.dot(h, w2_ref[...], preferred_element_type=jnp.float32) + b2_ref[...]
    h = jnp.maximum(h, 0.0)
    h = h * s2_ref[...] + t2_ref[...]          # folded eval-mode BatchNorm1d

    # ---- output layer (out_features=1): lane reduction instead of N=1 matmul ----
    out = jnp.sum(h * w3t_ref[...], axis=-1, keepdims=True) + b3_ref[...]
    out_ref[...] = out.astype(out_ref.dtype)


@functools.partial(jax.jit, static_argnames=("block_batch",))
def stack_linear_dnn_forward(drug1, drug2, cell, params, block_batch=128):
    """drug1/drug2: (B, d_drug); cell: (B, stack_size, d_cell)."""
    B, d_drug = drug1.shape
    _, S, Dc = cell.shape

    w1, b1 = params["lin1"]
    w2, b2 = params["lin2"]
    w3, b3 = params["lin3"]
    H, H2 = w1.shape[1], w2.shape[1]
    eps = 1e-5

    # Fold BatchNorm1d (eval mode) into per-channel scale/shift.
    g1, be1, m1, v1 = params["bn1"]
    g2, be2, m2, v2 = params["bn2"]
    s1 = (g1 / jnp.sqrt(v1 + eps)).reshape(1, H)
    t1 = (be1 - m1 * (g1 / jnp.sqrt(v1 + eps))).reshape(1, H)
    s2 = (g2 / jnp.sqrt(v2 + eps)).reshape(1, H2)
    t2 = (be2 - m2 * (g2 / jnp.sqrt(v2 + eps))).reshape(1, H2)

    # Split W1 into row blocks so the concat never has to be materialized in-kernel.
    w1_d1 = w1[:d_drug]
    w1_d2 = w1[d_drug:2 * d_drug]
    w1_c = w1[2 * d_drug:]

    comp3 = params["compress"].reshape(1, S, 1)
    b1_2d = b1.reshape(1, H)
    b2_2d = b2.reshape(1, H2)
    b3_2d = b3.reshape(1, 1)
    w3t = w3.reshape(1, H2)   # (H2, 1) -> row vector for lane reduction

    # Pad the batch to a multiple of the batch tile.
    tb = min(block_batch, _round_up(B, 8))
    Bp = _round_up(B, tb)
    if Bp != B:
        pad = Bp - B
        drug1 = jnp.pad(drug1, ((0, pad), (0, 0)))
        drug2 = jnp.pad(drug2, ((0, pad), (0, 0)))
        cell = jnp.pad(cell, ((0, pad), (0, 0), (0, 0)))

    grid = (Bp // tb,)

    def batch_spec(shape):
        if len(shape) == 2:
            return pl.BlockSpec((tb, shape[1]), lambda i: (i, 0))
        return pl.BlockSpec((tb, shape[1], shape[2]), lambda i: (i, 0, 0))

    def resident_spec(arr):
        nd = arr.ndim
        return pl.BlockSpec(arr.shape, lambda i, _nd=nd: (0,) * _nd)

    param_arrays = [comp3, w1_d1, w1_d2, w1_c, b1_2d, s1, t1,
                    w2, b2_2d, s2, t2, w3t, b3_2d]

    flops = 2 * Bp * (S * Dc + 2 * d_drug * H + Dc * H + H * H2 + H2)
    bytes_accessed = 4 * (drug1.size + drug2.size + cell.size
                          + sum(int(a.size) for a in param_arrays) + Bp)

    out = pl.pallas_call(
        stack_dnn_kernel,
        out_shape=jax.ShapeDtypeStruct((Bp, 1), drug1.dtype),
        grid=grid,
        in_specs=[batch_spec(drug1.shape),
                  batch_spec(drug2.shape),
                  batch_spec(cell.shape)] + [resident_spec(a) for a in param_arrays],
        out_specs=pl.BlockSpec((tb, 1), lambda i: (i, 0)),
        compiler_params=pltpu.CompilerParams(dimension_semantics=("parallel",)),
        cost_estimate=pl.CostEstimate(flops=int(flops), transcendentals=0,
                                      bytes_accessed=int(bytes_accessed)),
    )(drug1, drug2, cell, *param_arrays)

    return out[:B]


def init_params(key, d_drug, d_cell, stack_size, hidden_size, dtype=jnp.float32):
    """Deterministic synthetic parameters matching the PyTorch __init__ layout."""
    input_size = 2 * d_drug + d_cell
    h2 = hidden_size // 2
    keys = iter(jax.random.split(key, 16))

    def linear(fan_in, fan_out):
        bound = 1.0 / jnp.sqrt(jnp.asarray(fan_in, dtype))
        w = jax.random.uniform(next(keys), (fan_in, fan_out), dtype, -bound, bound)
        b = jax.random.uniform(next(keys), (fan_out,), dtype, -bound, bound)
        return w, b

    def bn(n):
        gamma = jax.random.uniform(next(keys), (n,), dtype, 0.5, 1.5)
        beta = jax.random.normal(next(keys), (n,), dtype) * 0.1
        mean = jax.random.normal(next(keys), (n,), dtype) * 0.1
        var = jax.random.uniform(next(keys), (n,), dtype, 0.5, 1.5)
        return gamma, beta, mean, var

    compress = jax.random.normal(next(keys), (1, stack_size), dtype) * 0.8  # ~xavier
    lin1 = linear(input_size, hidden_size)
    bn1 = bn(hidden_size)
    lin2 = linear(hidden_size, h2)
    bn2 = bn(h2)
    lin3 = linear(h2, 1)
    return {"compress": compress, "lin1": lin1, "bn1": bn1,
            "lin2": lin2, "bn2": bn2, "lin3": lin3}


def reference_forward(drug1, drug2, cell, params, eps=1e-5):
    compress = params["compress"]
    cell_c = jnp.einsum("s,bsd->bd", compress[0], cell)
    feat = jnp.concatenate([drug1, drug2, cell_c], axis=1)
    w1, b1 = params["lin1"]
    g1, be1, m1, v1 = params["bn1"]
    w2, b2 = params["lin2"]
    g2, be2, m2, v2 = params["bn2"]
    w3, b3 = params["lin3"]
    h = jnp.maximum(feat @ w1 + b1, 0.0)
    h = (h - m1) / jnp.sqrt(v1 + eps) * g1 + be1
    h = jnp.maximum(h @ w2 + b2, 0.0)
    h = (h - m2) / jnp.sqrt(v2 + eps) * g2 + be2
    return h @ w3 + b3


if __name__ == "__main__":
    batch = 256          # 2 grid tiles of TB=128 -> full MXU M occupancy + pipelining
    d_drug = 64
    d_cell = 128
    stack_size = 4
    hidden = 128         # input_size = 2*64 + 128 = 256, hidden//2 = 64

    key = jax.random.PRNGKey(0)
    kd1, kd2, kc, kp = jax.random.split(key, 4)
    drug1 = jax.random.normal(kd1, (batch, d_drug), jnp.float32)
    drug2 = jax.random.normal(kd2, (batch, d_drug), jnp.float32)
    cell = jax.random.normal(kc, (batch, stack_size, d_cell), jnp.float32)
    params = init_params(kp, d_drug, d_cell, stack_size, hidden)

    out = stack_linear_dnn_forward(drug1, drug2, cell, params)
    out = jax.block_until_ready(out)

    ref = reference_forward(drug1, drug2, cell, params)
    assert out.shape == (batch, 1)
    max_err = float(jnp.max(jnp.abs(out - ref)))
    assert jnp.allclose(out, ref, atol=2e-3, rtol=2e-3), max_err

    print("KERNEL_OK")
</pallas_src>

<mosaic_0001>
module attributes {stable_mosaic.version = 11 : i64} {
  func.func @stack_dnn_kernel(%arg0: i32, %arg1: memref<128x64xf32, #tpu.memory_space<vmem>>, %arg2: memref<128x64xf32, #tpu.memory_space<vmem>>, %arg3: memref<128x4x128xf32, #tpu.memory_space<vmem>>, %arg4: memref<1x4x1xf32, #tpu.memory_space<vmem>>, %arg5: memref<64x128xf32, #tpu.memory_space<vmem>>, %arg6: memref<64x128xf32, #tpu.memory_space<vmem>>, %arg7: memref<128x128xf32, #tpu.memory_space<vmem>>, %arg8: memref<1x128xf32, #tpu.memory_space<vmem>>, %arg9: memref<1x128xf32, #tpu.memory_space<vmem>>, %arg10: memref<1x128xf32, #tpu.memory_space<vmem>>, %arg11: memref<128x64xf32, #tpu.memory_space<vmem>>, %arg12: memref<1x64xf32, #tpu.memory_space<vmem>>, %arg13: memref<1x64xf32, #tpu.memory_space<vmem>>, %arg14: memref<1x64xf32, #tpu.memory_space<vmem>>, %arg15: memref<1x64xf32, #tpu.memory_space<vmem>>, %arg16: memref<1x1xf32, #tpu.memory_space<vmem>>, %arg17: memref<128x1xf32, #tpu.memory_space<vmem>>) attributes {dimension_semantics = [#tpu.dimension_semantics<parallel>], iteration_bounds = array<i64: 2>, scalar_prefetch = 0 : i64, scratch_operands = 0 : i64, tpu.core_type = #tpu.core_type<tc>, window_params = [{transform_indices = @transform_0, window_bounds = array<i64: 128, 64>}, {transform_indices = @transform_1, window_bounds = array<i64: 128, 64>}, {transform_indices = @transform_2, window_bounds = array<i64: 128, 4, 128>}, {pipeline_mode = #tpu.pipeline_mode<synchronous>, transform_indices = @transform_3, window_bounds = array<i64: 1, 4, 1>}, {pipeline_mode = #tpu.pipeline_mode<synchronous>, transform_indices = @transform_4, window_bounds = array<i64: 64, 128>}, {pipeline_mode = #tpu.pipeline_mode<synchronous>, transform_indices = @transform_5, window_bounds = array<i64: 64, 128>}, {pipeline_mode = #tpu.pipeline_mode<synchronous>, transform_indices = @transform_6, window_bounds = array<i64: 128, 128>}, {pipeline_mode = #tpu.pipeline_mode<synchronous>, transform_indices = @transform_7, window_bounds = array<i64: 1, 128>}, {pipeline_mode = #tpu.pipeline_mode<synchronous>, transform_indices = @transform_8, window_bounds = array<i64: 1, 128>}, {pipeline_mode = #tpu.pipeline_mode<synchronous>, transform_indices = @transform_9, window_bounds = array<i64: 1, 128>}, {pipeline_mode = #tpu.pipeline_mode<synchronous>, transform_indices = @transform_10, window_bounds = array<i64: 128, 64>}, {pipeline_mode = #tpu.pipeline_mode<synchronous>, transform_indices = @transform_11, window_bounds = array<i64: 1, 64>}, {pipeline_mode = #tpu.pipeline_mode<synchronous>, transform_indices = @transform_12, window_bounds = array<i64: 1, 64>}, {pipeline_mode = #tpu.pipeline_mode<synchronous>, transform_indices = @transform_13, window_bounds = array<i64: 1, 64>}, {pipeline_mode = #tpu.pipeline_mode<synchronous>, transform_indices = @transform_14, window_bounds = array<i64: 1, 64>}, {pipeline_mode = #tpu.pipeline_mode<synchronous>, transform_indices = @transform_15, window_bounds = array<i64: 1, 1>}, {transform_indices = @transform_16, window_bounds = array<i64: 128, 1>}]} {
    %c0 = arith.constant 0 : index
    %c0_0 = arith.constant 0 : index
    %c0_1 = arith.constant 0 : index
    %0 = vector.load %arg3[%c0, %c0_0, %c0_1] : memref<128x4x128xf32, #tpu.memory_space<vmem>>, vector<128x4x128xf32>
    %c0_2 = arith.constant 0 : index
    %c0_3 = arith.constant 0 : index
    %c0_4 = arith.constant 0 : index
    %1 = vector.load %arg4[%c0_2, %c0_3, %c0_4] : memref<1x4x1xf32, #tpu.memory_space<vmem>>, vector<1x4x1xf32>
    %2 = vector.broadcast %1 : vector<1x4x1xf32> to vector<128x4x128xf32>
    %3 = arith.mulf %0, %2 : vector<128x4x128xf32>
    %cst = arith.constant dense<0.000000e+00> : vector<128x128xf32>
    %4 = vector.multi_reduction <add>, %3, %cst [1] : vector<128x4x128xf32> to vector<128x128xf32>
    %c0_5 = arith.constant 0 : index
    %c0_6 = arith.constant 0 : index
    %5 = vector.load %arg1[%c0_5, %c0_6] : memref<128x64xf32, #tpu.memory_space<vmem>>, vector<128x64xf32>
    %c0_7 = arith.constant 0 : index
    %c0_8 = arith.constant 0 : index
    %6 = vector.load %arg5[%c0_7, %c0_8] : memref<64x128xf32, #tpu.memory_space<vmem>>, vector<64x128xf32>
    %cst_9 = arith.constant dense<0.000000e+00> : vector<128x128xf32>
    %7 = tpu.matmul %5, %6, %cst_9 {dimension_numbers = #tpu.dot_dimension_numbers<[1], [0], [0], [1], [0, 0, 1, 1], [], []>} : vector<128x64xf32>, vector<64x128xf32>, vector<128x128xf32> -> vector<128x128xf32>
    %c0_10 = arith.constant 0 : index
    %c0_11 = arith.constant 0 : index
    %8 = vector.load %arg2[%c0_10, %c0_11] : memref<128x64xf32, #tpu.memory_space<vmem>>, vector<128x64xf32>
    %c0_12 = arith.constant 0 : index
    %c0_13 = arith.constant 0 : index
    %9 = vector.load %arg6[%c0_12, %c0_13] : memref<64x128xf32, #tpu.memory_space<vmem>>, vector<64x128xf32>
    %cst_14 = arith.constant dense<0.000000e+00> : vector<128x128xf32>
    %10 = tpu.matmul %8, %9, %cst_14 {dimension_numbers = #tpu.dot_dimension_numbers<[1], [0], [0], [1], [0, 0, 1, 1], [], []>} : vector<128x64xf32>, vector<64x128xf32>, vector<128x128xf32> -> vector<128x128xf32>
    %11 = arith.addf %7, %10 : vector<128x128xf32>
    %c0_15 = arith.constant 0 : index
    %c0_16 = arith.constant 0 : index
    %12 = vector.load %arg7[%c0_15, %c0_16] : memref<128x128xf32, #tpu.memory_space<vmem>>, vector<128x128xf32>
    %cst_17 = arith.constant dense<0.000000e+00> : vector<128x128xf32>
    %13 = tpu.matmul %4, %12, %cst_17 {dimension_numbers = #tpu.dot_dimension_numbers<[1], [0], [0], [1], [0, 0, 1, 1], [], []>} : vector<128x128xf32>, vector<128x128xf32>, vector<128x128xf32> -> vector<128x128xf32>
    %14 = arith.addf %11, %13 : vector<128x128xf32>
    %c0_18 = arith.constant 0 : index
    %c0_19 = arith.constant 0 : index
    %15 = vector.load %arg8[%c0_18, %c0_19] : memref<1x128xf32, #tpu.memory_space<vmem>>, vector<1x128xf32>
    %16 = vector.broadcast %15 : vector<1x128xf32> to vector<128x128xf32>
    %17 = arith.addf %14, %16 : vector<128x128xf32>
    %cst_20 = arith.constant 0.000000e+00 : f32
    %18 = vector.broadcast %cst_20 : f32 to vector<128x128xf32>
    %19 = arith.maximumf %17, %18 : vector<128x128xf32>
    %c0_21 = arith.constant 0 : index
    %c0_22 = arith.constant 0 : index
    %20 = vector.load %arg9[%c0_21, %c0_22] : memref<1x128xf32, #tpu.memory_space<vmem>>, vector<1x128xf32>
    %21 = vector.broadcast %20 : vector<1x128xf32> to vector<128x128xf32>
    %22 = arith.mulf %19, %21 : vector<128x128xf32>
    %c0_23 = arith.constant 0 : index
    %c0_24 = arith.constant 0 : index
    %23 = vector.load %arg10[%c0_23, %c0_24] : memref<1x128xf32, #tpu.memory_space<vmem>>, vector<1x128xf32>
    %24 = vector.broadcast %23 : vector<1x128xf32> to vector<128x128xf32>
    %25 = arith.addf %22, %24 : vector<128x128xf32>
    %c0_25 = arith.constant 0 : index
    %c0_26 = arith.constant 0 : index
    %26 = vector.load %arg11[%c0_25, %c0_26] : memref<128x64xf32, #tpu.memory_space<vmem>>, vector<128x64xf32>
    %cst_27 = arith.constant dense<0.000000e+00> : vector<128x64xf32>
    %27 = tpu.matmul %25, %26, %cst_27 {dimension_numbers = #tpu.dot_dimension_numbers<[1], [0], [0], [1], [0, 0, 1, 1], [], []>} : vector<128x128xf32>, vector<128x64xf32>, vector<128x64xf32> -> vector<128x64xf32>
    %c0_28 = arith.constant 0 : index
    %c0_29 = arith.constant 0 : index
    %28 = vector.load %arg12[%c0_28, %c0_29] : memref<1x64xf32, #tpu.memory_space<vmem>>, vector<1x64xf32>
    %29 = vector.broadcast %28 : vector<1x64xf32> to vector<128x64xf32>
    %30 = arith.addf %27, %29 : vector<128x64xf32>
    %cst_30 = arith.constant 0.000000e+00 : f32
    %31 = vector.broadcast %cst_30 : f32 to vector<128x64xf32>
    %32 = arith.maximumf %30, %31 : vector<128x64xf32>
    %c0_31 = arith.constant 0 : index
    %c0_32 = arith.constant 0 : index
    %33 = vector.load %arg13[%c0_31, %c0_32] : memref<1x64xf32, #tpu.memory_space<vmem>>, vector<1x64xf32>
    %34 = vector.broadcast %33 : vector<1x64xf32> to vector<128x64xf32>
    %35 = arith.mulf %32, %34 : vector<128x64xf32>
    %c0_33 = arith.constant 0 : index
    %c0_34 = arith.constant 0 : index
    %36 = vector.load %arg14[%c0_33, %c0_34] : memref<1x64xf32, #tpu.memory_space<vmem>>, vector<1x64xf32>
    %37 = vector.broadcast %36 : vector<1x64xf32> to vector<128x64xf32>
    %38 = arith.addf %35, %37 : vector<128x64xf32>
    %c0_35 = arith.constant 0 : index
    %c0_36 = arith.constant 0 : index
    %39 = vector.load %arg15[%c0_35, %c0_36] : memref<1x64xf32, #tpu.memory_space<vmem>>, vector<1x64xf32>
    %40 = vector.broadcast %39 : vector<1x64xf32> to vector<128x64xf32>
    %41 = arith.mulf %38, %40 : vector<128x64xf32>
    %cst_37 = arith.constant dense<0.000000e+00> : vector<128xf32>
    %42 = vector.multi_reduction <add>, %41, %cst_37 [1] : vector<128x64xf32> to vector<128xf32>
    %43 = vector.shape_cast %42 : vector<128xf32> to vector<128x1xf32>
    %c0_38 = arith.constant 0 : index
    %c0_39 = arith.constant 0 : index
    %44 = vector.load %arg16[%c0_38, %c0_39] : memref<1x1xf32, #tpu.memory_space<vmem>>, vector<1x1xf32>
    %45 = vector.broadcast %44 : vector<1x1xf32> to vector<128x1xf32>
    %46 = arith.addf %43, %45 : vector<128x1xf32>
    %c0_40 = arith.constant 0 : index
    %c0_41 = arith.constant 0 : index
    %47 = vector.load %arg17[%c0_40, %c0_41] : memref<128x1xf32, #tpu.memory_space<vmem>>, vector<128x1xf32>
    tpu.vector_store %arg17[%c0_40, %c0_41], %46 {strides = array<i32>} : memref<128x1xf32, #tpu.memory_space<vmem>>, vector<128x1xf32>,
    return
  }
  func.func @transform_0(%arg0: i32) -> (i32, i32) {
    %c0_i32 = arith.constant 0 : i32
    %c0_i32_0 = arith.constant 0 : i32
    return %arg0, %c0_i32 : i32, i32
  }
  func.func @transform_1(%arg0: i32) -> (i32, i32) {
    %c0_i32 = arith.constant 0 : i32
    %c0_i32_0 = arith.constant 0 : i32
    return %arg0, %c0_i32 : i32, i32
  }
  func.func @transform_2(%arg0: i32) -> (i32, i32, i32) {
    %c0_i32 = arith.constant 0 : i32
    %c0_i32_0 = arith.constant 0 : i32
    %c0_i32_1 = arith.constant 0 : i32
    return %arg0, %c0_i32, %c0_i32_0 : i32, i32, i32
  }
  func.func @transform_3(%arg0: i32) -> (i32, i32, i32) {
    %c0_i32 = arith.constant 0 : i32
    %c0_i32_0 = arith.constant 0 : i32
    %c0_i32_1 = arith.constant 0 : i32
    %c0_i32_2 = arith.constant 0 : i32
    return %c0_i32, %c0_i32_0, %c0_i32_1 : i32, i32, i32
  }
  func.func @transform_4(%arg0: i32) -> (i32, i32) {
    %c0_i32 = arith.constant 0 : i32
    %c0_i32_0 = arith.constant 0 : i32
    %c0_i32_1 = arith.constant 0 : i32
    return %c0_i32, %c0_i32_0 : i32, i32
  }
  func.func @transform_5(%arg0: i32) -> (i32, i32) {
    %c0_i32 = arith.constant 0 : i32
    %c0_i32_0 = arith.constant 0 : i32
    %c0_i32_1 = arith.constant 0 : i32
    return %c0_i32, %c0_i32_0 : i32, i32
  }
  func.func @transform_6(%arg0: i32) -> (i32, i32) {
    %c0_i32 = arith.constant 0 : i32
    %c0_i32_0 = arith.constant 0 : i32
    %c0_i32_1 = arith.constant 0 : i32
    return %c0_i32, %c0_i32_0 : i32, i32
  }
  func.func @transform_7(%arg0: i32) -> (i32, i32) {
    %c0_i32 = arith.constant 0 : i32
    %c0_i32_0 = arith.constant 0 : i32
    %c0_i32_1 = arith.constant 0 : i32
    return %c0_i32, %c0_i32_0 : i32, i32
  }
  func.func @transform_8(%arg0: i32) -> (i32, i32) {
    %c0_i32 = arith.constant 0 : i32
    %c0_i32_0 = arith.constant 0 : i32
    %c0_i32_1 = arith.constant 0 : i32
    return %c0_i32, %c0_i32_0 : i32, i32
  }
  func.func @transform_9(%arg0: i32) -> (i32, i32) {
    %c0_i32 = arith.constant 0 : i32
    %c0_i32_0 = arith.constant 0 : i32
    %c0_i32_1 = arith.constant 0 : i32
    return %c0_i32, %c0_i32_0 : i32, i32
  }
  func.func @transform_10(%arg0: i32) -> (i32, i32) {
    %c0_i32 = arith.constant 0 : i32
    %c0_i32_0 = arith.constant 0 : i32
    %c0_i32_1 = arith.constant 0 : i32
    return %c0_i32, %c0_i32_0 : i32, i32
  }
  func.func @transform_11(%arg0: i32) -> (i32, i32) {
    %c0_i32 = arith.constant 0 : i32
    %c0_i32_0 = arith.constant 0 : i32
    %c0_i32_1 = arith.constant 0 : i32
    return %c0_i32, %c0_i32_0 : i32, i32
  }
  func.func @transform_12(%arg0: i32) -> (i32, i32) {
    %c0_i32 = arith.constant 0 : i32
    %c0_i32_0 = arith.constant 0 : i32
    %c0_i32_1 = arith.constant 0 : i32
    return %c0_i32, %c0_i32_0 : i32, i32
  }
  func.func @transform_13(%arg0: i32) -> (i32, i32) {
    %c0_i32 = arith.constant 0 : i32
    %c0_i32_0 = arith.constant 0 : i32
    %c0_i32_1 = arith.constant 0 : i32
    return %c0_i32, %c0_i32_0 : i32, i32
  }
  func.func @transform_14(%arg0: i32) -> (i32, i32) {
    %c0_i32 = arith.constant 0 : i32
    %c0_i32_0 = arith.constant 0 : i32
    %c0_i32_1 = arith.constant 0 : i32
    return %c0_i32, %c0_i32_0 : i32, i32
  }
  func.func @transform_15(%arg0: i32) -> (i32, i32) {
    %c0_i32 = arith.constant 0 : i32
    %c0_i32_0 = arith.constant 0 : i32
    %c0_i32_1 = arith.constant 0 : i32
    return %c0_i32, %c0_i32_0 : i32, i32
  }
  func.func @transform_16(%arg0: i32) -> (i32, i32) {
    %c0_i32 = arith.constant 0 : i32
    %c0_i32_0 = arith.constant 0 : i32
    return %arg0, %c0_i32 : i32, i32
  }
}

</mosaic_0001>

<llo_original>
// kernel: stack_linear_dnn_forward.1
$region0: #{stack_linear_dnn_forward.1}
  #allocation0 [shape = 'u32[]', space=smem, size = 0x4, offset = 0x4, fixed_abs, tag = 'smem constant byte address 0x4 - core index']
  #allocation1 [shape = 'u32[144,128]{1,0:T(1,128)}', space=vmem, size = 0x12000, scoped, tag = 'internal scratch']
  #allocation2 [shape = 'f32[1,1]{1,0:T(1,128)S(1)}', space=vmem, size = 0x200, scoped, tag = 'scoped memory for stack_linear_dnn_forward.1']
  %s0 = inlined_call_operand.vmem [shape: f32[256,64], index: 0, kind: input, shape index: {}]
  %s1 = inlined_call_operand.vmem [shape: f32[256,64], index: 1, kind: input, shape index: {}]
  %s2 = inlined_call_operand.vmem [shape: f32[256,4,128], index: 2, kind: input, shape index: {}]
  %s3 = inlined_call_operand.vmem [shape: f32[1,4,1], index: 3, kind: input, shape index: {}]
  %s4 = inlined_call_operand.vmem [shape: f32[64,128], index: 4, kind: input, shape index: {}]
  %s5 = inlined_call_operand.vmem [shape: f32[64,128], index: 5, kind: input, shape index: {}]
  %s6 = inlined_call_operand.vmem [shape: f32[128,128], index: 6, kind: input, shape index: {}]
  %s7 = inlined_call_operand.vmem [shape: f32[1,128], index: 7, kind: input, shape index: {}]
  %s8 = inlined_call_operand.vmem [shape: f32[1,128], index: 8, kind: input, shape index: {}]
  %s9 = inlined_call_operand.vmem [shape: f32[1,128], index: 9, kind: input, shape index: {}]
  %s10 = inlined_call_operand.vmem [shape: f32[128,64], index: 10, kind: input, shape index: {}]
  %s11 = inlined_call_operand.vmem [shape: f32[1,64], index: 11, kind: input, shape index: {}]
  %s12 = inlined_call_operand.vmem [shape: f32[1,64], index: 12, kind: input, shape index: {}]
  %s13 = inlined_call_operand.vmem [shape: f32[1,64], index: 13, kind: input, shape index: {}]
  %s14 = inlined_call_operand.vmem [shape: f32[1,64], index: 14, kind: input, shape index: {}]
  %s15 = inlined_call_operand.<no memory space> [shape: f32[1,1], index: 15, kind: input, shape index: {}]
  %s16 = inlined_call_operand.vmem [shape: f32[256,1], index: 16, kind: output, shape index: {}]
  %s17 = sld [smem:[#allocation0]]
  $region97: #{stack_linear_dnn_forward.1} parent=0
    _
  %s19 = ssub.s32 1, %s17
  %s20 = scalar_select 0, %s19, %s17
  %v21 = vstv %s15
  %22 = vst [vmem:[#allocation2] sm:$0x1] %v21
  loop: start=0, step=1, limit=4
  $region2: #{stack_linear_dnn_forward.1} parent=0 // loop_pre_header
    _
  $region3: #{stack_linear_dnn_forward.1} parent=0 // loop_header
    %s24 = sphi 0, %s28
    %p25 = scmp.ge.s32.totalorder %s24, 4
    %s34 = sphi 0, %s36
    %s37 = sphi 0, %s34
    %s38 = sphi 0, %s37
    %s54 = sphi 0, %s38
    %s60 = sphi 0, %s62
    %s63 = sphi 0, %s60
    %s64 = sphi 0, %s63
    %s80 = sphi 0, %s64
    %s86 = sphi 0, %s88
    %s89 = sphi 0, %s86
    %s90 = sphi 0, %s89
    %s106 = sphi 0, %s90
    %s110 = sphi 0, %s110
    %s112 = sphi 0, %s110
    %s113 = sphi 0, %s112
    %s127 = sphi 0, %s113
    %s131 = sphi 0, %s131
    %s133 = sphi 0, %s131
    %s134 = sphi 0, %s133
    %s148 = sphi 0, %s134
    %s152 = sphi 0, %s152
    %s154 = sphi 0, %s152
    %s155 = sphi 0, %s154
    %s169 = sphi 0, %s155
    %s173 = sphi 0, %s173
    %s175 = sphi 0, %s173
    %s176 = sphi 0, %s175
    %s190 = sphi 0, %s176
    %s194 = sphi 0, %s194
    %s196 = sphi 0, %s194
    %s197 = sphi 0, %s196
    %s211 = sphi 0, %s197
    %s215 = sphi 0, %s215
    %s217 = sphi 0, %s215
    %s218 = sphi 0, %s217
    %s232 = sphi 0, %s218
    %s236 = sphi 0, %s236
    %s238 = sphi 0, %s236
    %s239 = sphi 0, %s238
    %s253 = sphi 0, %s239
    %s257 = sphi 0, %s257
    %s259 = sphi 0, %s257
    %s260 = sphi 0, %s259
    %s274 = sphi 0, %s260
    %s278 = sphi 0, %s278
    %s280 = sphi 0, %s278
    %s281 = sphi 0, %s280
    %s295 = sphi 0, %s281
    %s299 = sphi 0, %s299
    %s301 = sphi 0, %s299
    %s302 = sphi 0, %s301
    %s316 = sphi 0, %s302
    %s320 = sphi 0, %s320
    %s322 = sphi 0, %s320
    %s323 = sphi 0, %s322
    %s337 = sphi 0, %s323
    %s341 = sphi 0, %s341
    %s343 = sphi 0, %s341
    %s344 = sphi 0, %s343
    %s358 = sphi 0, %s344
    %s362 = sphi 0, %s362
    %s364 = sphi 0, %s362
    %s365 = sphi 0, %s364
    %s379 = sphi 0, %s365
    %s385 = sphi 0, %s387
    %s388 = sphi 0, %s385
    %s389 = sphi 0, %s388
    %s405 = sphi 0, %s389
  $region4: #{stack_linear_dnn_forward.1} parent=0 // loop_header_branch
    %27 = sbr.rel (%p25) target = $region8
  $region5: #{stack_linear_dnn_forward.1} parent=0 // loop_body
    %s29 = ssub.s32 %s24, 1
    %s30 = ssub.s32 %s24, 2
    %s31 = sadd.s32 %s24, 1
    %s32 = ssub.s32 %s24, %s31
    %p33 = scmp.eq.s32.totalorder %s32, 0
    %s35 = sadd.s32 %s34, 1
    %s36 = scalar_select %p33, %s34, %s35
    %p39 = pneg %p33
    %p40 = scmp.eq.s32.totalorder %s24, 1
    %p41 = por %p39, %p40
    %p42 = scmp.ne.s32.totalorder %s34, %s37
    %p43 = scmp.eq.s32.totalorder %s24, 0
    %p44 = por %p42, %p43
    %p45 = scmp.ne.s32.totalorder %s34, %s37
    %p46 = scmp.eq.s32.totalorder %s29, 1
    %p47 = por %p45, %p46
    %p48 = scmp.ne.s32.totalorder %s37, %s38
    %p49 = scmp.eq.s32.totalorder %s29, 0
    %p50 = por %p48, %p49
    %p51 = scmp.ne.s32.totalorder %s37, %s38
    %p52 = scmp.eq.s32.totalorder %s30, 1
    %p53 = por %p51, %p52
    %p55 = scmp.ne.s32.totalorder %s38, %s54
    %p56 = scmp.eq.s32.totalorder %s30, 0
    %p57 = por %p55, %p56
    %s58 = ssub.s32 %s24, %s31
    %p59 = scmp.eq.s32.totalorder %s58, 0
    %s61 = sadd.s32 %s60, 1
    %s62 = scalar_select %p59, %s60, %s61
    %p65 = pneg %p59
    %p66 = scmp.eq.s32.totalorder %s24, 1
    %p67 = por %p65, %p66
    %p68 = scmp.ne.s32.totalorder %s60, %s63
    %p69 = scmp.eq.s32.totalorder %s24, 0
    %p70 = por %p68, %p69
    %p71 = scmp.ne.s32.totalorder %s60, %s63
    %p72 = scmp.eq.s32.totalorder %s29, 1
    %p73 = por %p71, %p72
    %p74 = scmp.ne.s32.totalorder %s63, %s64
    %p75 = scmp.eq.s32.totalorder %s29, 0
    %p76 = por %p74, %p75
    %p77 = scmp.ne.s32.totalorder %s63, %s64
    %p78 = scmp.eq.s32.totalorder %s30, 1
    %p79 = por %p77, %p78
    %p81 = scmp.ne.s32.totalorder %s64, %s80
    %p82 = scmp.eq.s32.totalorder %s30, 0
    %p83 = por %p81, %p82
    %s84 = ssub.s32 %s24, %s31
    %p85 = scmp.eq.s32.totalorder %s84, 0
    %s87 = sadd.s32 %s86, 1
    %s88 = scalar_select %p85, %s86, %s87
    %p91 = pneg %p85
    %p92 = scmp.eq.s32.totalorder %s24, 1
    %p93 = por %p91, %p92
    %p94 = scmp.ne.s32.totalorder %s86, %s89
    %p95 = scmp.eq.s32.totalorder %s24, 0
    %p96 = por %p94, %p95
    %p97 = scmp.ne.s32.totalorder %s86, %s89
    %p98 = scmp.eq.s32.totalorder %s29, 1
    %p99 = por %p97, %p98
    %p100 = scmp.ne.s32.totalorder %s89, %s90
    %p101 = scmp.eq.s32.totalorder %s29, 0
    %p102 = por %p100, %p101
    %p103 = scmp.ne.s32.totalorder %s89, %s90
    %p104 = scmp.eq.s32.totalorder %s30, 1
    %p105 = por %p103, %p104
    %p107 = scmp.ne.s32.totalorder %s90, %s106
    %p108 = scmp.eq.s32.totalorder %s30, 0
    %p109 = por %p107, %p108
    %s111 = sadd.s32 %s110, 1
    %p114 = scmp.eq.s32.totalorder %s24, 1
    %p115 = scmp.ne.s32.totalorder %s110, %s112
    %p116 = scmp.eq.s32.totalorder %s24, 0
    %p117 = por %p115, %p116
    %p118 = scmp.ne.s32.totalorder %s110, %s112
    %p119 = scmp.eq.s32.totalorder %s29, 1
    %p120 = por %p118, %p119
    %p121 = scmp.ne.s32.totalorder %s112, %s113
    %p122 = scmp.eq.s32.totalorder %s29, 0
    %p123 = por %p121, %p122
    %p124 = scmp.ne.s32.totalorder %s112, %s113
    %p125 = scmp.eq.s32.totalorder %s30, 1
    %p126 = por %p124, %p125
    %p128 = scmp.ne.s32.totalorder %s113, %s127
    %p129 = scmp.eq.s32.totalorder %s30, 0
    %p130 = por %p128, %p129
    %s132 = sadd.s32 %s131, 1
    %p135 = scmp.eq.s32.totalorder %s24, 1
    %p136 = scmp.ne.s32.totalorder %s131, %s133
    %p137 = scmp.eq.s32.totalorder %s24, 0
    %p138 = por %p136, %p137
    %p139 = scmp.ne.s32.totalorder %s131, %s133
    %p140 = scmp.eq.s32.totalorder %s29, 1
    %p141 = por %p139, %p140
    %p142 = scmp.ne.s32.totalorder %s133, %s134
    %p143 = scmp.eq.s32.totalorder %s29, 0
    %p144 = por %p142, %p143
    %p145 = scmp.ne.s32.totalorder %s133, %s134
    %p146 = scmp.eq.s32.totalorder %s30, 1
    %p147 = por %p145, %p146
    %p149 = scmp.ne.s32.totalorder %s134, %s148
    %p150 = scmp.eq.s32.totalorder %s30, 0
    %p151 = por %p149, %p150
    %s153 = sadd.s32 %s152, 1
    %p156 = scmp.eq.s32.totalorder %s24, 1
    %p157 = scmp.ne.s32.totalorder %s152, %s154
    %p158 = scmp.eq.s32.totalorder %s24, 0
    %p159 = por %p157, %p158
    %p160 = scmp.ne.s32.totalorder %s152, %s154
    %p161 = scmp.eq.s32.totalorder %s29, 1
    %p162 = por %p160, %p161
    %p163 = scmp.ne.s32.totalorder %s154, %s155
    %p164 = scmp.eq.s32.totalorder %s29, 0
    %p165 = por %p163, %p164
    %p166 = scmp.ne.s32.totalorder %s154, %s155
    %p167 = scmp.eq.s32.totalorder %s30, 1
    %p168 = por %p166, %p167
    %p170 = scmp.ne.s32.totalorder %s155, %s169
    %p171 = scmp.eq.s32.totalorder %s30, 0
    %p172 = por %p170, %p171
    %s174 = sadd.s32 %s173, 1
    %p177 = scmp.eq.s32.totalorder %s24, 1
    %p178 = scmp.ne.s32.totalorder %s173, %s175
    %p179 = scmp.eq.s32.totalorder %s24, 0
    %p180 = por %p178, %p179
    %p181 = scmp.ne.s32.totalorder %s173, %s175
    %p182 = scmp.eq.s32.totalorder %s29, 1
    %p183 = por %p181, %p182
    %p184 = scmp.ne.s32.totalorder %s175, %s176
    %p185 = scmp.eq.s32.totalorder %s29, 0
    %p186 = por %p184, %p185
    %p187 = scmp.ne.s32.totalorder %s175, %s176
    %p188 = scmp.eq.s32.totalorder %s30, 1
    %p189 = por %p187, %p188
    %p191 = scmp.ne.s32.totalorder %s176, %s190
    %p192 = scmp.eq.s32.totalorder %s30, 0
    %p193 = por %p191, %p192
    %s195 = sadd.s32 %s194, 1
    %p198 = scmp.eq.s32.totalorder %s24, 1
    %p199 = scmp.ne.s32.totalorder %s194, %s196
    %p200 = scmp.eq.s32.totalorder %s24, 0
    %p201 = por %p199, %p200
    %p202 = scmp.ne.s32.totalorder %s194, %s196
    %p203 = scmp.eq.s32.totalorder %s29, 1
    %p204 = por %p202, %p203
    %p205 = scmp.ne.s32.totalorder %s196, %s197
    %p206 = scmp.eq.s32.totalorder %s29, 0
    %p207 = por %p205, %p206
    %p208 = scmp.ne.s32.totalorder %s196, %s197
    %p209 = scmp.eq.s32.totalorder %s30, 1
    %p210 = por %p208, %p209
    %p212 = scmp.ne.s32.totalorder %s197, %s211
    %p213 = scmp.eq.s32.totalorder %s30, 0
    %p214 = por %p212, %p213
    %s216 = sadd.s32 %s215, 1
    %p219 = scmp.eq.s32.totalorder %s24, 1
    %p220 = scmp.ne.s32.totalorder %s215, %s217
    %p221 = scmp.eq.s32.totalorder %s24, 0
    %p222 = por %p220, %p221
    %p223 = scmp.ne.s32.totalorder %s215, %s217
    %p224 = scmp.eq.s32.totalorder %s29, 1
    %p225 = por %p223, %p224
    %p226 = scmp.ne.s32.totalorder %s217, %s218
    %p227 = scmp.eq.s32.totalorder %s29, 0
    %p228 = por %p226, %p227
    %p229 = scmp.ne.s32.totalorder %s217, %s218
    %p230 = scmp.eq.s32.totalorder %s30, 1
    %p231 = por %p229, %p230
    %p233 = scmp.ne.s32.totalorder %s218, %s232
    %p234 = scmp.eq.s32.totalorder %s30, 0
    %p235 = por %p233, %p234
    %s237 = sadd.s32 %s236, 1
    %p240 = scmp.eq.s32.totalorder %s24, 1
    %p241 = scmp.ne.s32.totalorder %s236, %s238
    %p242 = scmp.eq.s32.totalorder %s24, 0
    %p243 = por %p241, %p242
    %p244 = scmp.ne.s32.totalorder %s236, %s238
    %p245 = scmp.eq.s32.totalorder %s29, 1
    %p246 = por %p244, %p245
    %p247 = scmp.ne.s32.totalorder %s238, %s239
    %p248 = scmp.eq.s32.totalorder %s29, 0
    %p249 = por %p247, %p248
    %p250 = scmp.ne.s32.totalorder %s238, %s239
    %p251 = scmp.eq.s32.totalorder %s30, 1
    %p252 = por %p250, %p251
    %p254 = scmp.ne.s32.totalorder %s239, %s253
    %p255 = scmp.eq.s32.totalorder %s30, 0
    %p256 = por %p254, %p255
    %s258 = sadd.s32 %s257, 1
    %p261 = scmp.eq.s32.totalorder %s24, 1
    %p262 = scmp.ne.s32.totalorder %s257, %s259
    %p263 = scmp.eq.s32.totalorder %s24, 0
    %p264 = por %p262, %p263
    %p265 = scmp.ne.s32.totalorder %s257, %s259
    %p266 = scmp.eq.s32.totalorder %s29, 1
    %p267 = por %p265, %p266
    %p268 = scmp.ne.s32.totalorder %s259, %s260
    %p269 = scmp.eq.s32.totalorder %s29, 0
    %p270 = por %p268, %p269
    %p271 = scmp.ne.s32.totalorder %s259, %s260
    %p272 = scmp.eq.s32.totalorder %s30, 1
    %p273 = por %p271, %p272
    %p275 = scmp.ne.s32.totalorder %s260, %s274
    %p276 = scmp.eq.s32.totalorder %s30, 0
    %p277 = por %p275, %p276
    %s279 = sadd.s32 %s278, 1
    %p282 = scmp.eq.s32.totalorder %s24, 1
    %p283 = scmp.ne.s32.totalorder %s278, %s280
    %p284 = scmp.eq.s32.totalorder %s24, 0
    %p285 = por %p283, %p284
    %p286 = scmp.ne.s32.totalorder %s278, %s280
    %p287 = scmp.eq.s32.totalorder %s29, 1
    %p288 = por %p286, %p287
    %p289 = scmp.ne.s32.totalorder %s280, %s281
    %p290 = scmp.eq.s32.totalorder %s29, 0
    %p291 = por %p289, %p290
    %p292 = scmp.ne.s32.totalorder %s280, %s281
    %p293 = scmp.eq.s32.totalorder %s30, 1
    %p294 = por %p292, %p293
    %p296 = scmp.ne.s32.totalorder %s281, %s295
    %p297 = scmp.eq.s32.totalorder %s30, 0
    %p298 = por %p296, %p297
    %s300 = sadd.s32 %s299, 1
    %p303 = scmp.eq.s32.totalorder %s24, 1
    %p304 = scmp.ne.s32.totalorder %s299, %s301
    %p305 = scmp.eq.s32.totalorder %s24, 0
    %p306 = por %p304, %p305
    %p307 = scmp.ne.s32.totalorder %s299, %s301
    %p308 = scmp.eq.s32.totalorder %s29, 1
    %p309 = por %p307, %p308
    %p310 = scmp.ne.s32.totalorder %s301, %s302
    %p311 = scmp.eq.s32.totalorder %s29, 0
    %p312 = por %p310, %p311
    %p313 = scmp.ne.s32.totalorder %s301, %s302
    %p314 = scmp.eq.s32.totalorder %s30, 1
    %p315 = por %p313, %p314
    %p317 = scmp.ne.s32.totalorder %s302, %s316
    %p318 = scmp.eq.s32.totalorder %s30, 0
    %p319 = por %p317, %p318
    %s321 = sadd.s32 %s320, 1
    %p324 = scmp.eq.s32.totalorder %s24, 1
    %p325 = scmp.ne.s32.totalorder %s320, %s322
    %p326 = scmp.eq.s32.totalorder %s24, 0
    %p327 = por %p325, %p326
    %p328 = scmp.ne.s32.totalorder %s320, %s322
    %p329 = scmp.eq.s32.totalorder %s29, 1
    %p330 = por %p328, %p329
    %p331 = scmp.ne.s32.totalorder %s322, %s323
    %p332 = scmp.eq.s32.totalorder %s29, 0
    %p333 = por %p331, %p332
    %p334 = scmp.ne.s32.totalorder %s322, %s323
    %p335 = scmp.eq.s32.totalorder %s30, 1
    %p336 = por %p334, %p335
    %p338 = scmp.ne.s32.totalorder %s323, %s337
    %p339 = scmp.eq.s32.totalorder %s30, 0
    %p340 = por %p338, %p339
    %s342 = sadd.s32 %s341, 1
    %p345 = scmp.eq.s32.totalorder %s24, 1
    %p346 = scmp.ne.s32.totalorder %s341, %s343
    %p347 = scmp.eq.s32.totalorder %s24, 0
    %p348 = por %p346, %p347
    %p349 = scmp.ne.s32.totalorder %s341, %s343
    %p350 = scmp.eq.s32.totalorder %s29, 1
    %p351 = por %p349, %p350
    %p352 = scmp.ne.s32.totalorder %s343, %s344
    %p353 = scmp.eq.s32.totalorder %s29, 0
    %p354 = por %p352, %p353
    %p355 = scmp.ne.s32.totalorder %s343, %s344
    %p356 = scmp.eq.s32.totalorder %s30, 1
    %p357 = por %p355, %p356
    %p359 = scmp.ne.s32.totalorder %s344, %s358
    %p360 = scmp.eq.s32.totalorder %s30, 0
    %p361 = por %p359, %p360
    %s363 = sadd.s32 %s362, 1
    %p366 = scmp.eq.s32.totalorder %s24, 1
    %p367 = scmp.ne.s32.totalorder %s362, %s364
    %p368 = scmp.eq.s32.totalorder %s24, 0
    %p369 = por %p367, %p368
    %p370 = scmp.ne.s32.totalorder %s362, %s364
    %p371 = scmp.eq.s32.totalorder %s29, 1
    %p372 = por %p370, %p371
    %p373 = scmp.ne.s32.totalorder %s364, %s365
    %p374 = scmp.eq.s32.totalorder %s29, 0
    %p375 = por %p373, %p374
    %p376 = scmp.ne.s32.totalorder %s364, %s365
    %p377 = scmp.eq.s32.totalorder %s30, 1
    %p378 = por %p376, %p377
    %p380 = scmp.ne.s32.totalorder %s365, %s379
    %p381 = scmp.eq.s32.totalorder %s30, 0
    %p382 = por %p380, %p381
    %s383 = ssub.s32 %s24, %s31
    %p384 = scmp.eq.s32.totalorder %s383, 0
    %s386 = sadd.s32 %s385, 1
    %s387 = scalar_select %p384, %s385, %s386
    %p390 = pneg %p384
    %p391 = scmp.eq.s32.totalorder %s24, 1
    %p392 = por %p390, %p391
    %p393 = scmp.ne.s32.totalorder %s385, %s388
    %p394 = scmp.eq.s32.totalorder %s24, 0
    %p395 = por %p393, %p394
    %p396 = scmp.ne.s32.totalorder %s385, %s388
    %p397 = scmp.eq.s32.totalorder %s29, 1
    %p398 = por %p396, %p397
    %p399 = scmp.ne.s32.totalorder %s388, %s389
    %p400 = scmp.eq.s32.totalorder %s29, 0
    %p401 = por %p399, %p400
    %p402 = scmp.ne.s32.totalorder %s388, %s389
    %p403 = scmp.eq.s32.totalorder %s30, 1
    %p404 = por %p402, %p403
    %p406 = scmp.ne.s32.totalorder %s389, %s405
    %p407 = scmp.eq.s32.totalorder %s30, 0
    %p408 = por %p406, %p407
    %p409 = scmp.le.s32.totalorder 1, %s24
    %p410 = scmp.lt.s32.totalorder %s24, 3
    %p411 = pnand %p409, %p410
    %p412 = pneg %p411
    // Predicated region
    $region9: #{stack_linear_dnn_forward.1} parent=5 // pred_check
      _
    $region10: #{stack_linear_dnn_forward.1} parent=5 // pred_check_branch
      %414 = sbr.rel (%p411) target = $region12
    $region11: #{stack_linear_dnn_forward.1} parent=5 // pred_region
      %s415 = ssub.s32 %s24, 1
      // Predicated region
      $region13: #{stack_linear_dnn_forward.1} parent=11 // pred_check
        %p416 = pneg %p123
      $region14: #{stack_linear_dnn_forward.1} parent=11 // pred_check_branch
        %418 = sbr.rel (%p416) target = $region16
      $region15: #{stack_linear_dnn_forward.1} parent=11 // pred_region
        _
      $region16: #{stack_linear_dnn_forward.1} parent=11 // pred_fallthru
        _
      // Predicated region
      $region17: #{stack_linear_dnn_forward.1} parent=11 // pred_check
        %p419 = pneg %p144
      $region18: #{stack_linear_dnn_forward.1} parent=11 // pred_check_branch
        %421 = sbr.rel (%p419) target = $region20
      $region19: #{stack_linear_dnn_forward.1} parent=11 // pred_region
        _
      $region20: #{stack_linear_dnn_forward.1} parent=11 // pred_fallthru
        _
      // Predicated region
      $region21: #{stack_linear_dnn_forward.1} parent=11 // pred_check
        %p422 = pneg %p165
      $region22: #{stack_linear_dnn_forward.1} parent=11 // pred_check_branch
        %424 = sbr.rel (%p422) target = $region24
      $region23: #{stack_linear_dnn_forward.1} parent=11 // pred_region
        _
      $region24: #{stack_linear_dnn_forward.1} parent=11 // pred_fallthru
        _
      // Predicated region
      $region25: #{stack_linear_dnn_forward.1} parent=11 // pred_check
        %p425 = pneg %p186
      $region26: #{stack_linear_dnn_forward.1} parent=11 // pred_check_branch
        %427 = sbr.rel (%p425) target = $region28
      $region27: #{stack_linear_dnn_forward.1} parent=11 // pred_region
        _
      $region28: #{stack_linear_dnn_forward.1} parent=11 // pred_fallthru
        _
      // Predicated region
      $region29: #{stack_linear_dnn_forward.1} parent=11 // pred_check
        %p428 = pneg %p207
      $region30: #{stack_linear_dnn_forward.1} parent=11 // pred_check_branch
        %430 = sbr.rel (%p428) target = $region32
      $region31: #{stack_linear_dnn_forward.1} parent=11 // pred_region
        _
      $region32: #{stack_linear_dnn_forward.1} parent=11 // pred_fallthru
        _
      // Predicated region
      $region33: #{stack_linear_dnn_forward.1} parent=11 // pred_check
        %p431 = pneg %p228
      $region34: #{stack_linear_dnn_forward.1} parent=11 // pred_check_branch
        %433 = sbr.rel (%p431) target = $region36
      $region35: #{stack_linear_dnn_forward.1} parent=11 // pred_region
        _
      $region36: #{stack_linear_dnn_forward.1} parent=11 // pred_fallthru
        _
      // Predicated region
      $region37: #{stack_linear_dnn_forward.1} parent=11 // pred_check
        %p434 = pneg %p249
      $region38: #{stack_linear_dnn_forward.1} parent=11 // pred_check_branch
        %436 = sbr.rel (%p434) target = $region40
      $region39: #{stack_linear_dnn_forward.1} parent=11 // pred_region
        _
      $region40: #{stack_linear_dnn_forward.1} parent=11 // pred_fallthru
        _
      // Predicated region
      $region41: #{stack_linear_dnn_forward.1} parent=11 // pred_check
        %p437 = pneg %p270
      $region42: #{stack_linear_dnn_forward.1} parent=11 // pred_check_branch
        %439 = sbr.rel (%p437) target = $region44
      $region43: #{stack_linear_dnn_forward.1} parent=11 // pred_region
        _
      $region44: #{stack_linear_dnn_forward.1} parent=11 // pred_fallthru
        _
      // Predicated region
      $region45: #{stack_linear_dnn_forward.1} parent=11 // pred_check
        %p440 = pneg %p291
      $region46: #{stack_linear_dnn_forward.1} parent=11 // pred_check_branch
        %442 = sbr.rel (%p440) target = $region48
      $region47: #{stack_linear_dnn_forward.1} parent=11 // pred_region
        _
      $region48: #{stack_linear_dnn_forward.1} parent=11 // pred_fallthru
        _
      // Predicated region
      $region49: #{stack_linear_dnn_forward.1} parent=11 // pred_check
        %p443 = pneg %p312
      $region50: #{stack_linear_dnn_forward.1} parent=11 // pred_check_branch
        %445 = sbr.rel (%p443) target = $region52
      $region51: #{stack_linear_dnn_forward.1} parent=11 // pred_region
        _
      $region52: #{stack_linear_dnn_forward.1} parent=11 // pred_fallthru
        _
      // Predicated region
      $region53: #{stack_linear_dnn_forward.1} parent=11 // pred_check
        %p446 = pneg %p333
      $region54: #{stack_linear_dnn_forward.1} parent=11 // pred_check_branch
        %448 = sbr.rel (%p446) target = $region56
      $region55: #{stack_linear_dnn_forward.1} parent=11 // pred_region
        _
      $region56: #{stack_linear_dnn_forward.1} parent=11 // pred_fallthru
        _
      // Predicated region
      $region57: #{stack_linear_dnn_forward.1} parent=11 // pred_check
        %p449 = pneg %p354
      $region58: #{stack_linear_dnn_forward.1} parent=11 // pred_check_branch
        %451 = sbr.rel (%p449) target = $region60
      $region59: #{stack_linear_dnn_forward.1} parent=11 // pred_region
        _
      $region60: #{stack_linear_dnn_forward.1} parent=11 // pred_fallthru
        _
      // Predicated region
      $region61: #{stack_linear_dnn_forward.1} parent=11 // pred_check
        %p452 = pneg %p375
      $region62: #{stack_linear_dnn_forward.1} parent=11 // pred_check_branch
        %454 = sbr.rel (%p452) target = $region64
      $region63: #{stack_linear_dnn_forward.1} parent=11 // pred_region
        _
      $region64: #{stack_linear_dnn_forward.1} parent=11 // pred_fallthru
        _
    $region12: #{stack_linear_dnn_forward.1} parent=5 // pred_fallthru
      _
    %p455 = scmp.lt.s32.totalorder %s24, 2
    // Predicated region
    $region65: #{stack_linear_dnn_forward.1} parent=5 // pred_check
      %p456 = pneg %p455
    $region66: #{stack_linear_dnn_forward.1} parent=5 // pred_check_branch
      %458 = sbr.rel (%p456) target = $region68
    $region67: #{stack_linear_dnn_forward.1} parent=5 // pred_region
      // Predicated region
      $region69: #{stack_linear_dnn_forward.1} parent=67 // pred_check
        %p459 = pneg %p44
      $region70: #{stack_linear_dnn_forward.1} parent=67 // pred_check_branch
        %461 = sbr.rel (%p459) target = $region72
      $region71: #{stack_linear_dnn_forward.1} parent=67 // pred_region
        %s462 = smul.u32 16, %s24
        %p463 = scmp.lt.s32.totalorder %s462, 31
        %s464 = scalar_select %p463, %s462, 31
        %s465 = smul.addr %s464, 8
        %s466 = scalar_lea.vmem %s0, %s465
        %s467 = smul.u32 16, %s24
      $region72: #{stack_linear_dnn_forward.1} parent=67 // pred_fallthru
        _
      // Predicated region
      $region73: #{stack_linear_dnn_forward.1} parent=67 // pred_check
        %p468 = pneg %p70
      $region74: #{stack_linear_dnn_forward.1} parent=67 // pred_check_branch
        %470 = sbr.rel (%p468) target = $region76
      $region75: #{stack_linear_dnn_forward.1} parent=67 // pred_region
        %s471 = smul.u32 16, %s24
        %p472 = scmp.lt.s32.totalorder %s471, 31
        %s473 = scalar_select %p472, %s471, 31
        %s474 = smul.addr %s473, 8
        %s475 = scalar_lea.vmem %s1, %s474
        %s476 = smul.u32 16, %s24
      $region76: #{stack_linear_dnn_forward.1} parent=67 // pred_fallthru
        _
      // Predicated region
      $region77: #{stack_linear_dnn_forward.1} parent=67 // pred_check
        %p477 = pneg %p96
      $region78: #{stack_linear_dnn_forward.1} parent=67 // pred_check_branch
        %479 = sbr.rel (%p477) target = $region80
      $region79: #{stack_linear_dnn_forward.1} parent=67 // pred_region
        %s480 = smul.u32 128, %s24
        %p481 = scmp.lt.s32.totalorder %s480, 255
        %s482 = scalar_select %p481, %s480, 255
        %s483 = smul.addr %s482, 4
        %s484 = scalar_lea.vmem %s2, %s483
        %s485 = smul.u32 128, %s24
      $region80: #{stack_linear_dnn_forward.1} parent=67 // pred_fallthru
        _
    $region68: #{stack_linear_dnn_forward.1} parent=5 // pred_fallthru
      _
    %p486 = scmp.le.s32.totalorder 1, %s24
    %p487 = scmp.lt.s32.totalorder %s24, 3
    %p488 = pnand %p486, %p487
    %p489 = pneg %p488
    // Predicated region
    $region81: #{stack_linear_dnn_forward.1} parent=5 // pred_check
      _
    $region82: #{stack_linear_dnn_forward.1} parent=5 // pred_check_branch
      %491 = sbr.rel (%p488) target = $region84
    $region83: #{stack_linear_dnn_forward.1} parent=5 // pred_region
      %s492 = ssub.s32 %s24, 1
      %s493 = smul.u32 16, %s29
      %p494 = scmp.lt.s32.totalorder %s493, 31
      %s495 = scalar_select %p494, %s493, 31
      %s496 = smul.addr %s495, 8
      %s497 = scalar_lea.vmem %s0, %s496
      %p498 = pneg %p50
      %p499 = pneg %p47
      %s500 = smul.u32 16, %s29
      %p501 = scmp.lt.s32.totalorder %s500, 31
      %s502 = scalar_select %p501, %s500, 31
      %s503 = smul.addr %s502, 8
      %s504 = scalar_lea.vmem %s1, %s503
      %p505 = pneg %p76
      %p506 = pneg %p73
      %s507 = smul.u32 128, %s29
      %p508 = scmp.lt.s32.totalorder %s507, 255
      %s509 = scalar_select %p508, %s507, 255
      %s510 = smul.addr %s509, 4
      %s511 = scalar_lea.vmem %s2, %s510
      %p512 = pneg %p102
      %p513 = pneg %p99
      %p514 = pneg %p123
      %p515 = pneg %p120
      %p516 = pneg %p144
      %p517 = pneg %p141
      %p518 = pneg %p165
      %p519 = pneg %p162
      %p520 = pneg %p186
      %p521 = pneg %p183
      %p522 = pneg %p207
      %p523 = pneg %p204
      %p524 = pneg %p228
      %p525 = pneg %p225
      %p526 = pneg %p249
      %p527 = pneg %p246
      %p528 = pneg %p270
      %p529 = pneg %p267
      %p530 = pneg %p291
      %p531 = pneg %p288
      %p532 = pneg %p312
      %p533 = pneg %p309
      %p534 = pneg %p333
      %p535 = pneg %p330
      %p536 = pneg %p354
      %p537 = pneg %p351
      %p538 = pneg %p375
      %p539 = pneg %p372
      %p540 = pneg %p401
      %p541 = pneg %p398
      %s542 = smul.u32 16, %s29
      %p543 = scmp.lt.s32.totalorder %s542, 31
      %s544 = scalar_select %p543, %s542, 31
      %s545 = smul.addr %s544, 8
      %s546 = scalar_lea.vmem %s16, %s545
      %s547 = smul.u32 16, %s29
      %p548 = scmp.lt.s32.totalorder %s547, 31
      %s549 = scalar_select %p548, %s547, 31
      %s550 = smul.addr %s549, 8
      %s551 = scalar_lea.vmem %s0, %s550
      %s552 = smul.u32 16, %s29
      %s553 = smul.u32 16, %s29
      %p554 = scmp.lt.s32.totalorder %s553, 31
      %s555 = scalar_select %p554, %s553, 31
      %s556 = smul.addr %s555, 8
      %s557 = scalar_lea.vmem %s1, %s556
      %s558 = smul.u32 16, %s29
      %s559 = smul.u32 128, %s29
      %p560 = scmp.lt.s32.totalorder %s559, 255
      %s561 = scalar_select %p560, %s559, 255
      %s562 = smul.addr %s561, 4
      %s563 = scalar_lea.vmem %s2, %s562
      %s564 = smul.u32 128, %s29
      %s565 = smul.u32 16, %s29
      %p566 = scmp.lt.s32.totalorder %s565, 31
      %s567 = scalar_select %p566, %s565, 31
      %s568 = smul.addr %s567, 8
      %s569 = scalar_lea.vmem %s16, %s568
      %s570 = smul.u32 16, %s29
      %v571 = vld [vmem:[%s563] sm:$0xf]
      %v572 = vld [vmem:[%s563 + $0x4] sm:$0xf]
      %v573 = vld [vmem:[%s563 + $0x8] sm:$0xf]
      %v574 = vld [vmem:[%s563 + $0xc] sm:$0xf]
      %v575 = vld [vmem:[%s563 + $0x10] sm:$0xf]
      %v576 = vld [vmem:[%s563 + $0x14] sm:$0xf]
      %v577 = vld [vmem:[%s563 + $0x18] sm:$0xf]
      %v578 = vld [vmem:[%s563 + $0x1c] sm:$0xf]
      %v579 = vld [vmem:[%s563 + $0x20] sm:$0xf]
      %v580 = vld [vmem:[%s563 + $0x24] sm:$0xf]
      %v581 = vld [vmem:[%s563 + $0x28] sm:$0xf]
      %v582 = vld [vmem:[%s563 + $0x2c] sm:$0xf]
      %v583 = vld [vmem:[%s563 + $0x30] sm:$0xf]
      %v584 = vld [vmem:[%s563 + $0x34] sm:$0xf]
      %v585 = vld [vmem:[%s563 + $0x38] sm:$0xf]
      %v586 = vld [vmem:[%s563 + $0x3c] sm:$0xf]
      %v587 = vld [vmem:[%s563 + $0x40] sm:$0xf]
      %v588 = vld [vmem:[%s563 + $0x44] sm:$0xf]
      %v589 = vld [vmem:[%s563 + $0x48] sm:$0xf]
      %v590 = vld [vmem:[%s563 + $0x4c] sm:$0xf]
      %v591 = vld [vmem:[%s563 + $0x50] sm:$0xf]
      %v592 = vld [vmem:[%s563 + $0x54] sm:$0xf]
      %v593 = vld [vmem:[%s563 + $0x58] sm:$0xf]
      %v594 = vld [vmem:[%s563 + $0x5c] sm:$0xf]
      %v595 = vld [vmem:[%s563 + $0x60] sm:$0xf]
      %v596 = vld [vmem:[%s563 + $0x64] sm:$0xf]
      %v597 = vld [vmem:[%s563 + $0x68] sm:$0xf]
      %v598 = vld [vmem:[%s563 + $0x6c] sm:$0xf]
      %v599 = vld [vmem:[%s563 + $0x70] sm:$0xf]
      %v600 = vld [vmem:[%s563 + $0x74] sm:$0xf]
      %v601 = vld [vmem:[%s563 + $0x78] sm:$0xf]
      %v602 = vld [vmem:[%s563 + $0x7c] sm:$0xf]
      %v603 = vld [vmem:[%s563 + $0x80] sm:$0xf]
      %v604 = vld [vmem:[%s563 + $0x84] sm:$0xf]
      %v605 = vld [vmem:[%s563 + $0x88] sm:$0xf]
      %v606 = vld [vmem:[%s563 + $0x8c] sm:$0xf]
      %v607 = vld [vmem:[%s563 + $0x90] sm:$0xf]
      %v608 = vld [vmem:[%s563 + $0x94] sm:$0xf]
      %v609 = vld [vmem:[%s563 + $0x98] sm:$0xf]
      %v610 = vld [vmem:[%s563 + $0x9c] sm:$0xf]
      %v611 = vld [vmem:[%s563 + $0xa0] sm:$0xf]
      %v612 = vld [vmem:[%s563 + $0xa4] sm:$0xf]
      %v613 = vld [vmem:[%s563 + $0xa8] sm:$0xf]
      %v614 = vld [vmem:[%s563 + $0xac] sm:$0xf]
      %v615 = vld [vmem:[%s563 + $0xb0] sm:$0xf]
      %v616 = vld [vmem:[%s563 + $0xb4] sm:$0xf]
      %v617 = vld [vmem:[%s563 + $0xb8] sm:$0xf]
      %v618 = vld [vmem:[%s563 + $0xbc] sm:$0xf]
      %v619 = vld [vmem:[%s563 + $0xc0] sm:$0xf]
      %v620 = vld [vmem:[%s563 + $0xc4] sm:$0xf]
      %v621 = vld [vmem:[%s563 + $0xc8] sm:$0xf]
      %v622 = vld [vmem:[%s563 + $0xcc] sm:$0xf]
      %v623 = vld [vmem:[%s563 + $0xd0] sm:$0xf]
      %v624 = vld [vmem:[%s563 + $0xd4] sm:$0xf]
      %v625 = vld [vmem:[%s563 + $0xd8] sm:$0xf]
      %v626 = vld [vmem:[%s563 + $0xdc] sm:$0xf]
      %v627 = vld [vmem:[%s563 + $0xe0] sm:$0xf]
      %v628 = vld [vmem:[%s563 + $0xe4] sm:$0xf]
      %v629 = vld [vmem:[%s563 + $0xe8] sm:$0xf]
      %v630 = vld [vmem:[%s563 + $0xec] sm:$0xf]
      %v631 = vld [vmem:[%s563 + $0xf0] sm:$0xf]
      %v632 = vld [vmem:[%s563 + $0xf4] sm:$0xf]
      %v633 = vld [vmem:[%s563 + $0xf8] sm:$0xf]
      %v634 = vld [vmem:[%s563 + $0xfc] sm:$0xf]
      %v635 = vld [vmem:[%s563 + $0x100] sm:$0xf]
      %v636 = vld [vmem:[%s563 + $0x104] sm:$0xf]
      %v637 = vld [vmem:[%s563 + $0x108] sm:$0xf]
      %v638 = vld [vmem:[%s563 + $0x10c] sm:$0xf]
      %v639 = vld [vmem:[%s563 + $0x110] sm:$0xf]
      %v640 = vld [vmem:[%s563 + $0x114] sm:$0xf]
      %v641 = vld [vmem:[%s563 + $0x118] sm:$0xf]
      %v642 = vld [vmem:[%s563 + $0x11c] sm:$0xf]
      %v643 = vld [vmem:[%s563 + $0x120] sm:$0xf]
      %v644 = vld [vmem:[%s563 + $0x124] sm:$0xf]
      %v645 = vld [vmem:[%s563 + $0x128] sm:$0xf]
      %v646 = vld [vmem:[%s563 + $0x12c] sm:$0xf]
      %v647 = vld [vmem:[%s563 + $0x130] sm:$0xf]
      %v648 = vld [vmem:[%s563 + $0x134] sm:$0xf]
      %v649 = vld [vmem:[%s563 + $0x138] sm:$0xf]
      %v650 = vld [vmem:[%s563 + $0x13c] sm:$0xf]
      %v651 = vld [vmem:[%s563 + $0x140] sm:$0xf]
      %v652 = vld [vmem:[%s563 + $0x144] sm:$0xf]
      %v653 = vld [vmem:[%s563 + $0x148] sm:$0xf]
      %v654 = vld [vmem:[%s563 + $0x14c] sm:$0xf]
      %v655 = vld [vmem:[%s563 + $0x150] sm:$0xf]
      %v656 = vld [vmem:[%s563 + $0x154] sm:$0xf]
      %v657 = vld [vmem:[%s563 + $0x158] sm:$0xf]
      %v658 = vld [vmem:[%s563 + $0x15c] sm:$0xf]
      %v659 = vld [vmem:[%s563 + $0x160] sm:$0xf]
      %v660 = vld [vmem:[%s563 + $0x164] sm:$0xf]
      %v661 = vld [vmem:[%s563 + $0x168] sm:$0xf]
      %v662 = vld [vmem:[%s563 + $0x16c] sm:$0xf]
      %v663 = vld [vmem:[%s563 + $0x170] sm:$0xf]
      %v664 = vld [vmem:[%s563 + $0x174] sm:$0xf]
      %v665 = vld [vmem:[%s563 + $0x178] sm:$0xf]
      %v666 = vld [vmem:[%s563 + $0x17c] sm:$0xf]
      %v667 = vld [vmem:[%s563 + $0x180] sm:$0xf]
      %v668 = vld [vmem:[%s563 + $0x184] sm:$0xf]
      %v669 = vld [vmem:[%s563 + $0x188] sm:$0xf]
      %v670 = vld [vmem:[%s563 + $0x18c] sm:$0xf]
      %v671 = vld [vmem:[%s563 + $0x190] sm:$0xf]
      %v672 = vld [vmem:[%s563 + $0x194] sm:$0xf]
      %v673 = vld [vmem:[%s563 + $0x198] sm:$0xf]
      %v674 = vld [vmem:[%s563 + $0x19c] sm:$0xf]
      %v675 = vld [vmem:[%s563 + $0x1a0] sm:$0xf]
      %v676 = vld [vmem:[%s563 + $0x1a4] sm:$0xf]
      %v677 = vld [vmem:[%s563 + $0x1a8] sm:$0xf]
      %v678 = vld [vmem:[%s563 + $0x1ac] sm:$0xf]
      %v679 = vld [vmem:[%s563 + $0x1b0] sm:$0xf]
      %v680 = vld [vmem:[%s563 + $0x1b4] sm:$0xf]
      %v681 = vld [vmem:[%s563 + $0x1b8] sm:$0xf]
      %v682 = vld [vmem:[%s563 + $0x1bc] sm:$0xf]
      %v683 = vld [vmem:[%s563 + $0x1c0] sm:$0xf]
      %v684 = vld [vmem:[%s563 + $0x1c4] sm:$0xf]
      %v685 = vld [vmem:[%s563 + $0x1c8] sm:$0xf]
      %v686 = vld [vmem:[%s563 + $0x1cc] sm:$0xf]
      %v687 = vld [vmem:[%s563 + $0x1d0] sm:$0xf]
      %v688 = vld [vmem:[%s563 + $0x1d4] sm:$0xf]
      %v689 = vld [vmem:[%s563 + $0x1d8] sm:$0xf]
      %v690 = vld [vmem:[%s563 + $0x1dc] sm:$0xf]
      %v691 = vld [vmem:[%s563 + $0x1e0] sm:$0xf]
      %v692 = vld [vmem:[%s563 + $0x1e4] sm:$0xf]
      %v693 = vld [vmem:[%s563 + $0x1e8] sm:$0xf]
      %v694 = vld [vmem:[%s563 + $0x1ec] sm:$0xf]
      %v695 = vld [vmem:[%s563 + $0x1f0] sm:$0xf]
      %v696 = vld [vmem:[%s563 + $0x1f4] sm:$0xf]
      %v697 = vld [vmem:[%s563 + $0x1f8] sm:$0xf]
      %v698 = vld [vmem:[%s563 + $0x1fc] sm:$0xf]
      %v699 = vld [vmem:[%s3] sm:$0xf]
      %701 = vset.pattern.permute.xlu0 0
      %702 = vperm.xlu0 %701, %v699
      %v703 = vpop.permute.xlu0 %702
      %v705 = vmul.f32 %v571, %v703
      %v706 = vmul.f32 %v572, %v703
      %v707 = vmul.f32 %v573, %v703
      %v708 = vmul.f32 %v574, %v703
      %v709 = vmul.f32 %v575, %v703
      %v710 = vmul.f32 %v576, %v703
      %v711 = vmul.f32 %v577, %v703
      %v712 = vmul.f32 %v578, %v703
      %v713 = vmul.f32 %v579, %v703
      %v714 = vmul.f32 %v580, %v703
      %v715 = vmul.f32 %v581, %v703
      %v716 = vmul.f32 %v582, %v703
      %v717 = vmul.f32 %v583, %v703
      %v718 = vmul.f32 %v584, %v703
      %v719 = vmul.f32 %v585, %v703
      %v720 = vmul.f32 %v586, %v703
      %v721 = vmul.f32 %v587, %v703
      %v722 = vmul.f32 %v588, %v703
      %v723 = vmul.f32 %v589, %v703
      %v724 = vmul.f32 %v590, %v703
      %v725 = vmul.f32 %v591, %v703
      %v726 = vmul.f32 %v592, %v703
      %v727 = vmul.f32 %v593, %v703
      %v728 = vmul.f32 %v594, %v703
      %v729 = vmul.f32 %v595, %v703
      %v730 = vmul.f32 %v596, %v703
      %v731 = vmul.f32 %v597, %v703
      %v732 = vmul.f32 %v598, %v703
      %v733 = vmul.f32 %v599, %v703
      %v734 = vmul.f32 %v600, %v703
      %v735 = vmul.f32 %v601, %v703
      %v736 = vmul.f32 %v602, %v703
      %v737 = vmul.f32 %v603, %v703
      %v738 = vmul.f32 %v604, %v703
      %v739 = vmul.f32 %v605, %v703
      %v740 = vmul.f32 %v606, %v703
      %v741 = vmul.f32 %v607, %v703
      %v742 = vmul.f32 %v608, %v703
      %v743 = vmul.f32 %v609, %v703
      %v744 = vmul.f32 %v610, %v703
      %v745 = vmul.f32 %v611, %v703
      %v746 = vmul.f32 %v612, %v703
      %v747 = vmul.f32 %v613, %v703
      %v748 = vmul.f32 %v614, %v703
      %v749 = vmul.f32 %v615, %v703
      %v750 = vmul.f32 %v616, %v703
      %v751 = vmul.f32 %v617, %v703
      %v752 = vmul.f32 %v618, %v703
      %v753 = vmul.f32 %v619, %v703
      %v754 = vmul.f32 %v620, %v703
      %v755 = vmul.f32 %v621, %v703
      %v756 = vmul.f32 %v622, %v703
      %v757 = vmul.f32 %v623, %v703
      %v758 = vmul.f32 %v624, %v703
      %v759 = vmul.f32 %v625, %v703
      %v760 = vmul.f32 %v626, %v703
      %v761 = vmul.f32 %v627, %v703
      %v762 = vmul.f32 %v628, %v703
      %v763 = vmul.f32 %v629, %v703
      %v764 = vmul.f32 %v630, %v703
      %v765 = vmul.f32 %v631, %v703
      %v766 = vmul.f32 %v632, %v703
      %v767 = vmul.f32 %v633, %v703
      %v768 = vmul.f32 %v634, %v703
      %v769 = vmul.f32 %v635, %v703
      %v770 = vmul.f32 %v636, %v703
      %v771 = vmul.f32 %v637, %v703
      %v772 = vmul.f32 %v638, %v703
      %v773 = vmul.f32 %v639, %v703
      %v774 = vmul.f32 %v640, %v703
      %v775 = vmul.f32 %v641, %v703
      %v776 = vmul.f32 %v642, %v703
      %v777 = vmul.f32 %v643, %v703
      %v778 = vmul.f32 %v644, %v703
      %v779 = vmul.f32 %v645, %v703
      %v780 = vmul.f32 %v646, %v703
      %v781 = vmul.f32 %v647, %v703
      %v782 = vmul.f32 %v648, %v703
      %v783 = vmul.f32 %v649, %v703
      %v784 = vmul.f32 %v650, %v703
      %v785 = vmul.f32 %v651, %v703
      %v786 = vmul.f32 %v652, %v703
      %v787 = vmul.f32 %v653, %v703
      %v788 = vmul.f32 %v654, %v703
      %v789 = vmul.f32 %v655, %v703
      %v790 = vmul.f32 %v656, %v703
      %v791 = vmul.f32 %v657, %v703
      %v792 = vmul.f32 %v658, %v703
      %v793 = vmul.f32 %v659, %v703
      %v794 = vmul.f32 %v660, %v703
      %v795 = vmul.f32 %v661, %v703
      %v796 = vmul.f32 %v662, %v703
      %v797 = vmul.f32 %v663, %v703
      %v798 = vmul.f32 %v664, %v703
      %v799 = vmul.f32 %v665, %v703
      %v800 = vmul.f32 %v666, %v703
      %v801 = vmul.f32 %v667, %v703
      %v802 = vmul.f32 %v668, %v703
      %v803 = vmul.f32 %v669, %v703
      %v804 = vmul.f32 %v670, %v703
      %v805 = vmul.f32 %v671, %v703
      %v806 = vmul.f32 %v672, %v703
      %v807 = vmul.f32 %v673, %v703
      %v808 = vmul.f32 %v674, %v703
      %v809 = vmul.f32 %v675, %v703
      %v810 = vmul.f32 %v676, %v703
      %v811 = vmul.f32 %v677, %v703
      %v812 = vmul.f32 %v678, %v703
      %v813 = vmul.f32 %v679, %v703
      %v814 = vmul.f32 %v680, %v703
      %v815 = vmul.f32 %v681, %v703
      %v816 = vmul.f32 %v682, %v703
      %v817 = vmul.f32 %v683, %v703
      %v818 = vmul.f32 %v684, %v703
      %v819 = vmul.f32 %v685, %v703
      %v820 = vmul.f32 %v686, %v703
      %v821 = vmul.f32 %v687, %v703
      %v822 = vmul.f32 %v688, %v703
      %v823 = vmul.f32 %v689, %v703
      %v824 = vmul.f32 %v690, %v703
      %v825 = vmul.f32 %v691, %v703
      %v826 = vmul.f32 %v692, %v703
      %v827 = vmul.f32 %v693, %v703
      %v828 = vmul.f32 %v694, %v703
      %v829 = vmul.f32 %v695, %v703
      %v830 = vmul.f32 %v696, %v703
      %v831 = vmul.f32 %v697, %v703
      %v832 = vmul.f32 %v698, %v703
      %vm833 = vcmask 1043456
      %v834 = vsel %vm833, %v705, 0.0
      %v835 = vrot.slane %v834, 4
      %v836 = vadd.f32 %v834, %v835
      %v837 = vrot.slane %v836, 2
      %v838 = vadd.f32 %v836, %v837
      %v839 = vrot.slane %v838, 1
      %v840 = vadd.f32 %v838, %v839
      %v841 = vsel %vm833, %v706, 0.0
      %v842 = vrot.slane %v841, 4
      %v843 = vadd.f32 %v841, %v842
      %v844 = vrot.slane %v843, 2
      %v845 = vadd.f32 %v843, %v844
      %v846 = vrot.slane %v845, 1
      %v847 = vadd.f32 %v845, %v846
      %v848 = vsel %vm833, %v707, 0.0
      %v849 = vrot.slane %v848, 4
      %v850 = vadd.f32 %v848, %v849
      %v851 = vrot.slane %v850, 2
      %v852 = vadd.f32 %v850, %v851
      %v853 = vrot.slane %v852, 1
      %v854 = vadd.f32 %v852, %v853
      %v855 = vsel %vm833, %v708, 0.0
      %v856 = vrot.slane %v855, 4
      %v857 = vadd.f32 %v855, %v856
      %v858 = vrot.slane %v857, 2
      %v859 = vadd.f32 %v857, %v858
      %v860 = vrot.slane %v859, 1
      %v861 = vadd.f32 %v859, %v860
      %v862 = vsel %vm833, %v709, 0.0
      %v863 = vrot.slane %v862, 4
      %v864 = vadd.f32 %v862, %v863
      %v865 = vrot.slane %v864, 2
      %v866 = vadd.f32 %v864, %v865
      %v867 = vrot.slane %v866, 1
      %v868 = vadd.f32 %v866, %v867
      %v869 = vsel %vm833, %v710, 0.0
      %v870 = vrot.slane %v869, 4
      %v871 = vadd.f32 %v869, %v870
      %v872 = vrot.slane %v871, 2
      %v873 = vadd.f32 %v871, %v872
      %v874 = vrot.slane %v873, 1
      %v875 = vadd.f32 %v873, %v874
      %v876 = vsel %vm833, %v711, 0.0
      %v877 = vrot.slane %v876, 4
      %v878 = vadd.f32 %v876, %v877
      %v879 = vrot.slane %v878, 2
      %v880 = vadd.f32 %v878, %v879
      %v881 = vrot.slane %v880, 1
      %v882 = vadd.f32 %v880, %v881
      %v883 = vsel %vm833, %v712, 0.0
      %v884 = vrot.slane %v883, 4
      %v885 = vadd.f32 %v883, %v884
      %v886 = vrot.slane %v885, 2
      %v887 = vadd.f32 %v885, %v886
      %v888 = vrot.slane %v887, 1
      %v889 = vadd.f32 %v887, %v888
      %v890 = vsel %vm833, %v713, 0.0
      %v891 = vrot.slane %v890, 4
      %v892 = vadd.f32 %v890, %v891
      %v893 = vrot.slane %v892, 2
      %v894 = vadd.f32 %v892, %v893
      %v895 = vrot.slane %v894, 1
      %v896 = vadd.f32 %v894, %v895
      %v897 = vsel %vm833, %v714, 0.0
      %v898 = vrot.slane %v897, 4
      %v899 = vadd.f32 %v897, %v898
      %v900 = vrot.slane %v899, 2
      %v901 = vadd.f32 %v899, %v900
      %v902 = vrot.slane %v901, 1
      %v903 = vadd.f32 %v901, %v902
      %v904 = vsel %vm833, %v715, 0.0
      %v905 = vrot.slane %v904, 4
      %v906 = vadd.f32 %v904, %v905
      %v907 = vrot.slane %v906, 2
      %v908 = vadd.f32 %v906, %v907
      %v909 = vrot.slane %v908, 1
      %v910 = vadd.f32 %v908, %v909
      %v911 = vsel %vm833, %v716, 0.0
      %v912 = vrot.slane %v911, 4
      %v913 = vadd.f32 %v911, %v912
      %v914 = vrot.slane %v913, 2
      %v915 = vadd.f32 %v913, %v914
      %v916 = vrot.slane %v915, 1
      %v917 = vadd.f32 %v915, %v916
      %v918 = vsel %vm833, %v717, 0.0
      %v919 = vrot.slane %v918, 4
      %v920 = vadd.f32 %v918, %v919
      %v921 = vrot.slane %v920, 2
      %v922 = vadd.f32 %v920, %v921
      %v923 = vrot.slane %v922, 1
      %v924 = vadd.f32 %v922, %v923
      %v925 = vsel %vm833, %v718, 0.0
      %v926 = vrot.slane %v925, 4
      %v927 = vadd.f32 %v925, %v926
      %v928 = vrot.slane %v927, 2
      %v929 = vadd.f32 %v927, %v928
      %v930 = vrot.slane %v929, 1
      %v931 = vadd.f32 %v929, %v930
      %v932 = vsel %vm833, %v719, 0.0
      %v933 = vrot.slane %v932, 4
      %v934 = vadd.f32 %v932, %v933
      %v935 = vrot.slane %v934, 2
      %v936 = vadd.f32 %v934, %v935
      %v937 = vrot.slane %v936, 1
      %v938 = vadd.f32 %v936, %v937
      %v939 = vsel %vm833, %v720, 0.0
      %v940 = vrot.slane %v939, 4
      %v941 = vadd.f32 %v939, %v940
      %v942 = vrot.slane %v941, 2
      %v943 = vadd.f32 %v941, %v942
      %v944 = vrot.slane %v943, 1
      %v945 = vadd.f32 %v943, %v944
      %v946 = vsel %vm833, %v721, 0.0
      %v947 = vrot.slane %v946, 4
      %v948 = vadd.f32 %v946, %v947
      %v949 = vrot.slane %v948, 2
      %v950 = vadd.f32 %v948, %v949
      %v951 = vrot.slane %v950, 1
      %v952 = vadd.f32 %v950, %v951
      %v953 = vsel %vm833, %v722, 0.0
      %v954 = vrot.slane %v953, 4
      %v955 = vadd.f32 %v953, %v954
      %v956 = vrot.slane %v955, 2
      %v957 = vadd.f32 %v955, %v956
      %v958 = vrot.slane %v957, 1
      %v959 = vadd.f32 %v957, %v958
      %v960 = vsel %vm833, %v723, 0.0
      %v961 = vrot.slane %v960, 4
      %v962 = vadd.f32 %v960, %v961
      %v963 = vrot.slane %v962, 2
      %v964 = vadd.f32 %v962, %v963
      %v965 = vrot.slane %v964, 1
      %v966 = vadd.f32 %v964, %v965
      %v967 = vsel %vm833, %v724, 0.0
      %v968 = vrot.slane %v967, 4
      %v969 = vadd.f32 %v967, %v968
      %v970 = vrot.slane %v969, 2
      %v971 = vadd.f32 %v969, %v970
      %v972 = vrot.slane %v971, 1
      %v973 = vadd.f32 %v971, %v972
      %v974 = vsel %vm833, %v725, 0.0
      %v975 = vrot.slane %v974, 4
      %v976 = vadd.f32 %v974, %v975
      %v977 = vrot.slane %v976, 2
      %v978 = vadd.f32 %v976, %v977
      %v979 = vrot.slane %v978, 1
      %v980 = vadd.f32 %v978, %v979
      %v981 = vsel %vm833, %v726, 0.0
      %v982 = vrot.slane %v981, 4
      %v983 = vadd.f32 %v981, %v982
      %v984 = vrot.slane %v983, 2
      %v985 = vadd.f32 %v983, %v984
      %v986 = vrot.slane %v985, 1
      %v987 = vadd.f32 %v985, %v986
      %v988 = vsel %vm833, %v727, 0.0
      %v989 = vrot.slane %v988, 4
      %v990 = vadd.f32 %v988, %v989
      %v991 = vrot.slane %v990, 2
      %v992 = vadd.f32 %v990, %v991
      %v993 = vrot.slane %v992, 1
      %v994 = vadd.f32 %v992, %v993
      %v995 = vsel %vm833, %v728, 0.0
      %v996 = vrot.slane %v995, 4
      %v997 = vadd.f32 %v995, %v996
      %v998 = vrot.slane %v997, 2
      %v999 = vadd.f32 %v997, %v998
      %v1000 = vrot.slane %v999, 1
      %v1001 = vadd.f32 %v999, %v1000
      %v1002 = vsel %vm833, %v729, 0.0
      %v1003 = vrot.slane %v1002, 4
      %v1004 = vadd.f32 %v1002, %v1003
      %v1005 = vrot.slane %v1004, 2
      %v1006 = vadd.f32 %v1004, %v1005
      %v1007 = vrot.slane %v1006, 1
      %v1008 = vadd.f32 %v1006, %v1007
      %v1009 = vsel %vm833, %v730, 0.0
      %v1010 = vrot.slane %v1009, 4
      %v1011 = vadd.f32 %v1009, %v1010
      %v1012 = vrot.slane %v1011, 2
      %v1013 = vadd.f32 %v1011, %v1012
      %v1014 = vrot.slane %v1013, 1
      %v1015 = vadd.f32 %v1013, %v1014
      %v1016 = vsel %vm833, %v731, 0.0
      %v1017 = vrot.slane %v1016, 4
      %v1018 = vadd.f32 %v1016, %v1017
      %v1019 = vrot.slane %v1018, 2
      %v1020 = vadd.f32 %v1018, %v1019
      %v1021 = vrot.slane %v1020, 1
      %v1022 = vadd.f32 %v1020, %v1021
      %v1023 = vsel %vm833, %v732, 0.0
      %v1024 = vrot.slane %v1023, 4
      %v1025 = vadd.f32 %v1023, %v1024
      %v1026 = vrot.slane %v1025, 2
      %v1027 = vadd.f32 %v1025, %v1026
      %v1028 = vrot.slane %v1027, 1
      %v1029 = vadd.f32 %v1027, %v1028
      %v1030 = vsel %vm833, %v733, 0.0
      %v1031 = vrot.slane %v1030, 4
      %v1032 = vadd.f32 %v1030, %v1031
      %v1033 = vrot.slane %v1032, 2
      %v1034 = vadd.f32 %v1032, %v1033
      %v1035 = vrot.slane %v1034, 1
      %v1036 = vadd.f32 %v1034, %v1035
      %v1037 = vsel %vm833, %v734, 0.0
      %v1038 = vrot.slane %v1037, 4
      %v1039 = vadd.f32 %v1037, %v1038
      %v1040 = vrot.slane %v1039, 2
      %v1041 = vadd.f32 %v1039, %v1040
      %v1042 = vrot.slane %v1041, 1
      %v1043 = vadd.f32 %v1041, %v1042
      %v1044 = vsel %vm833, %v735, 0.0
      %v1045 = vrot.slane %v1044, 4
      %v1046 = vadd.f32 %v1044, %v1045
      %v1047 = vrot.slane %v1046, 2
      %v1048 = vadd.f32 %v1046, %v1047
      %v1049 = vrot.slane %v1048, 1
      %v1050 = vadd.f32 %v1048, %v1049
      %v1051 = vsel %vm833, %v736, 0.0
      %v1052 = vrot.slane %v1051, 4
      %v1053 = vadd.f32 %v1051, %v1052
      %v1054 = vrot.slane %v1053, 2
      %v1055 = vadd.f32 %v1053, %v1054
      %v1056 = vrot.slane %v1055, 1
      %v1057 = vadd.f32 %v1055, %v1056
      %v1058 = vsel %vm833, %v737, 0.0
      %v1059 = vrot.slane %v1058, 4
      %v1060 = vadd.f32 %v1058, %v1059
      %v1061 = vrot.slane %v1060, 2
      %v1062 = vadd.f32 %v1060, %v1061
      %v1063 = vrot.slane %v1062, 1
      %v1064 = vadd.f32 %v1062, %v1063
      %v1065 = vsel %vm833, %v738, 0.0
      %v1066 = vrot.slane %v1065, 4
      %v1067 = vadd.f32 %v1065, %v1066
      %v1068 = vrot.slane %v1067, 2
      %v1069 = vadd.f32 %v1067, %v1068
      %v1070 = vrot.slane %v1069, 1
      %v1071 = vadd.f32 %v1069, %v1070
      %v1072 = vsel %vm833, %v739, 0.0
      %v1073 = vrot.slane %v1072, 4
      %v1074 = vadd.f32 %v1072, %v1073
      %v1075 = vrot.slane %v1074, 2
      %v1076 = vadd.f32 %v1074, %v1075
      %v1077 = vrot.slane %v1076, 1
      %v1078 = vadd.f32 %v1076, %v1077
      %v1079 = vsel %vm833, %v740, 0.0
      %v1080 = vrot.slane %v1079, 4
      %v1081 = vadd.f32 %v1079, %v1080
      %v1082 = vrot.slane %v1081, 2
      %v1083 = vadd.f32 %v1081, %v1082
      %v1084 = vrot.slane %v1083, 1
      %v1085 = vadd.f32 %v1083, %v1084
      %v1086 = vsel %vm833, %v741, 0.0
      %v1087 = vrot.slane %v1086, 4
      %v1088 = vadd.f32 %v1086, %v1087
      %v1089 = vrot.slane %v1088, 2
      %v1090 = vadd.f32 %v1088, %v1089
      %v1091 = vrot.slane %v1090, 1
      %v1092 = vadd.f32 %v1090, %v1091
      %v1093 = vsel %vm833, %v742, 0.0
      %v1094 = vrot.slane %v1093, 4
      %v1095 = vadd.f32 %v1093, %v1094
      %v1096 = vrot.slane %v1095, 2
      %v1097 = vadd.f32 %v1095, %v1096
      %v1098 = vrot.slane %v1097, 1
      %v1099 = vadd.f32 %v1097, %v1098
      %v1100 = vsel %vm833, %v743, 0.0
      %v1101 = vrot.slane %v1100, 4
      %v1102 = vadd.f32 %v1100, %v1101
      %v1103 = vrot.slane %v1102, 2
      %v1104 = vadd.f32 %v1102, %v1103
      %v1105 = vrot.slane %v1104, 1
      %v1106 = vadd.f32 %v1104, %v1105
      %v1107 = vsel %vm833, %v744, 0.0
      %v1108 = vrot.slane %v1107, 4
      %v1109 = vadd.f32 %v1107, %v1108
      %v1110 = vrot.slane %v1109, 2
      %v1111 = vadd.f32 %v1109, %v1110
      %v1112 = vrot.slane %v1111, 1
      %v1113 = vadd.f32 %v1111, %v1112
      %v1114 = vsel %vm833, %v745, 0.0
      %v1115 = vrot.slane %v1114, 4
      %v1116 = vadd.f32 %v1114, %v1115
      %v1117 = vrot.slane %v1116, 2
      %v1118 = vadd.f32 %v1116, %v1117
      %v1119 = vrot.slane %v1118, 1
      %v1120 = vadd.f32 %v1118, %v1119
      %v1121 = vsel %vm833, %v746, 0.0
      %v1122 = vrot.slane %v1121, 4
      %v1123 = vadd.f32 %v1121, %v1122
      %v1124 = vrot.slane %v1123, 2
      %v1125 = vadd.f32 %v1123, %v1124
      %v1126 = vrot.slane %v1125, 1
      %v1127 = vadd.f32 %v1125, %v1126
      %v1128 = vsel %vm833, %v747, 0.0
      %v1129 = vrot.slane %v1128, 4
      %v1130 = vadd.f32 %v1128, %v1129
      %v1131 = vrot.slane %v1130, 2
      %v1132 = vadd.f32 %v1130, %v1131
      %v1133 = vrot.slane %v1132, 1
      %v1134 = vadd.f32 %v1132, %v1133
      %v1135 = vsel %vm833, %v748, 0.0
      %v1136 = vrot.slane %v1135, 4
      %v1137 = vadd.f32 %v1135, %v1136
      %v1138 = vrot.slane %v1137, 2
      %v1139 = vadd.f32 %v1137, %v1138
      %v1140 = vrot.slane %v1139, 1
      %v1141 = vadd.f32 %v1139, %v1140
      %v1142 = vsel %vm833, %v749, 0.0
      %v1143 = vrot.slane %v1142, 4
      %v1144 = vadd.f32 %v1142, %v1143
      %v1145 = vrot.slane %v1144, 2
      %v1146 = vadd.f32 %v1144, %v1145
      %v1147 = vrot.slane %v1146, 1
      %v1148 = vadd.f32 %v1146, %v1147
      %v1149 = vsel %vm833, %v750, 0.0
      %v1150 = vrot.slane %v1149, 4
      %v1151 = vadd.f32 %v1149, %v1150
      %v1152 = vrot.slane %v1151, 2
      %v1153 = vadd.f32 %v1151, %v1152
      %v1154 = vrot.slane %v1153, 1
      %v1155 = vadd.f32 %v1153, %v1154
      %v1156 = vsel %vm833, %v751, 0.0
      %v1157 = vrot.slane %v1156, 4
      %v1158 = vadd.f32 %v1156, %v1157
      %v1159 = vrot.slane %v1158, 2
      %v1160 = vadd.f32 %v1158, %v1159
      %v1161 = vrot.slane %v1160, 1
      %v1162 = vadd.f32 %v1160, %v1161
      %v1163 = vsel %vm833, %v752, 0.0
      %v1164 = vrot.slane %v1163, 4
      %v1165 = vadd.f32 %v1163, %v1164
      %v1166 = vrot.slane %v1165, 2
      %v1167 = vadd.f32 %v1165, %v1166
      %v1168 = vrot.slane %v1167, 1
      %v1169 = vadd.f32 %v1167, %v1168
      %v1170 = vsel %vm833, %v753, 0.0
      %v1171 = vrot.slane %v1170, 4
      %v1172 = vadd.f32 %v1170, %v1171
      %v1173 = vrot.slane %v1172, 2
      %v1174 = vadd.f32 %v1172, %v1173
      %v1175 = vrot.slane %v1174, 1
      %v1176 = vadd.f32 %v1174, %v1175
      %v1177 = vsel %vm833, %v754, 0.0
      %v1178 = vrot.slane %v1177, 4
      %v1179 = vadd.f32 %v1177, %v1178
      %v1180 = vrot.slane %v1179, 2
      %v1181 = vadd.f32 %v1179, %v1180
      %v1182 = vrot.slane %v1181, 1
      %v1183 = vadd.f32 %v1181, %v1182
      %v1184 = vsel %vm833, %v755, 0.0
      %v1185 = vrot.slane %v1184, 4
      %v1186 = vadd.f32 %v1184, %v1185
      %v1187 = vrot.slane %v1186, 2
      %v1188 = vadd.f32 %v1186, %v1187
      %v1189 = vrot.slane %v1188, 1
      %v1190 = vadd.f32 %v1188, %v1189
      %v1191 = vsel %vm833, %v756, 0.0
      %v1192 = vrot.slane %v1191, 4
      %v1193 = vadd.f32 %v1191, %v1192
      %v1194 = vrot.slane %v1193, 2
      %v1195 = vadd.f32 %v1193, %v1194
      %v1196 = vrot.slane %v1195, 1
      %v1197 = vadd.f32 %v1195, %v1196
      %v1198 = vsel %vm833, %v757, 0.0
      %v1199 = vrot.slane %v1198, 4
      %v1200 = vadd.f32 %v1198, %v1199
      %v1201 = vrot.slane %v1200, 2
      %v1202 = vadd.f32 %v1200, %v1201
      %v1203 = vrot.slane %v1202, 1
      %v1204 = vadd.f32 %v1202, %v1203
      %v1205 = vsel %vm833, %v758, 0.0
      %v1206 = vrot.slane %v1205, 4
      %v1207 = vadd.f32 %v1205, %v1206
      %v1208 = vrot.slane %v1207, 2
      %v1209 = vadd.f32 %v1207, %v1208
      %v1210 = vrot.slane %v1209, 1
      %v1211 = vadd.f32 %v1209, %v1210
      %v1212 = vsel %vm833, %v759, 0.0
      %v1213 = vrot.slane %v1212, 4
      %v1214 = vadd.f32 %v1212, %v1213
      %v1215 = vrot.slane %v1214, 2
      %v1216 = vadd.f32 %v1214, %v1215
      %v1217 = vrot.slane %v1216, 1
      %v1218 = vadd.f32 %v1216, %v1217
      %v1219 = vsel %vm833, %v760, 0.0
      %v1220 = vrot.slane %v1219, 4
      %v1221 = vadd.f32 %v1219, %v1220
      %v1222 = vrot.slane %v1221, 2
      %v1223 = vadd.f32 %v1221, %v1222
      %v1224 = vrot.slane %v1223, 1
      %v1225 = vadd.f32 %v1223, %v1224
      %v1226 = vsel %vm833, %v761, 0.0
      %v1227 = vrot.slane %v1226, 4
      %v1228 = vadd.f32 %v1226, %v1227
      %v1229 = vrot.slane %v1228, 2
      %v1230 = vadd.f32 %v1228, %v1229
      %v1231 = vrot.slane %v1230, 1
      %v1232 = vadd.f32 %v1230, %v1231
      %v1233 = vsel %vm833, %v762, 0.0
      %v1234 = vrot.slane %v1233, 4
      %v1235 = vadd.f32 %v1233, %v1234
      %v1236 = vrot.slane %v1235, 2
      %v1237 = vadd.f32 %v1235, %v1236
      %v1238 = vrot.slane %v1237, 1
      %v1239 = vadd.f32 %v1237, %v1238
      %v1240 = vsel %vm833, %v763, 0.0
      %v1241 = vrot.slane %v1240, 4
      %v1242 = vadd.f32 %v1240, %v1241
      %v1243 = vrot.slane %v1242, 2
      %v1244 = vadd.f32 %v1242, %v1243
      %v1245 = vrot.slane %v1244, 1
      %v1246 = vadd.f32 %v1244, %v1245
      %v1247 = vsel %vm833, %v764, 0.0
      %v1248 = vrot.slane %v1247, 4
      %v1249 = vadd.f32 %v1247, %v1248
      %v1250 = vrot.slane %v1249, 2
      %v1251 = vadd.f32 %v1249, %v1250
      %v1252 = vrot.slane %v1251, 1
      %v1253 = vadd.f32 %v1251, %v1252
      %v1254 = vsel %vm833, %v765, 0.0
      %v1255 = vrot.slane %v1254, 4
      %v1256 = vadd.f32 %v1254, %v1255
      %v1257 = vrot.slane %v1256, 2
      %v1258 = vadd.f32 %v1256, %v1257
      %v1259 = vrot.slane %v1258, 1
      %v1260 = vadd.f32 %v1258, %v1259
      %v1261 = vsel %vm833, %v766, 0.0
      %v1262 = vrot.slane %v1261, 4
      %v1263 = vadd.f32 %v1261, %v1262
      %v1264 = vrot.slane %v1263, 2
      %v1265 = vadd.f32 %v1263, %v1264
      %v1266 = vrot.slane %v1265, 1
      %v1267 = vadd.f32 %v1265, %v1266
      %v1268 = vsel %vm833, %v767, 0.0
      %v1269 = vrot.slane %v1268, 4
      %v1270 = vadd.f32 %v1268, %v1269
      %v1271 = vrot.slane %v1270, 2
      %v1272 = vadd.f32 %v1270, %v1271
      %v1273 = vrot.slane %v1272, 1
      %v1274 = vadd.f32 %v1272, %v1273
      %v1275 = vsel %vm833, %v768, 0.0
      %v1276 = vrot.slane %v1275, 4
      %v1277 = vadd.f32 %v1275, %v1276
      %v1278 = vrot.slane %v1277, 2
      %v1279 = vadd.f32 %v1277, %v1278
      %v1280 = vrot.slane %v1279, 1
      %v1281 = vadd.f32 %v1279, %v1280
      %v1282 = vsel %vm833, %v769, 0.0
      %v1283 = vrot.slane %v1282, 4
      %v1284 = vadd.f32 %v1282, %v1283
      %v1285 = vrot.slane %v1284, 2
      %v1286 = vadd.f32 %v1284, %v1285
      %v1287 = vrot.slane %v1286, 1
      %v1288 = vadd.f32 %v1286, %v1287
      %v1289 = vsel %vm833, %v770, 0.0
      %v1290 = vrot.slane %v1289, 4
      %v1291 = vadd.f32 %v1289, %v1290
      %v1292 = vrot.slane %v1291, 2
      %v1293 = vadd.f32 %v1291, %v1292
      %v1294 = vrot.slane %v1293, 1
      %v1295 = vadd.f32 %v1293, %v1294
      %v1296 = vsel %vm833, %v771, 0.0
      %v1297 = vrot.slane %v1296, 4
      %v1298 = vadd.f32 %v1296, %v1297
      %v1299 = vrot.slane %v1298, 2
      %v1300 = vadd.f32 %v1298, %v1299
      %v1301 = vrot.slane %v1300, 1
      %v1302 = vadd.f32 %v1300, %v1301
      %v1303 = vsel %vm833, %v772, 0.0
      %v1304 = vrot.slane %v1303, 4
      %v1305 = vadd.f32 %v1303, %v1304
      %v1306 = vrot.slane %v1305, 2
      %v1307 = vadd.f32 %v1305, %v1306
      %v1308 = vrot.slane %v1307, 1
      %v1309 = vadd.f32 %v1307, %v1308
      %v1310 = vsel %vm833, %v773, 0.0
      %v1311 = vrot.slane %v1310, 4
      %v1312 = vadd.f32 %v1310, %v1311
      %v1313 = vrot.slane %v1312, 2
      %v1314 = vadd.f32 %v1312, %v1313
      %v1315 = vrot.slane %v1314, 1
      %v1316 = vadd.f32 %v1314, %v1315
      %v1317 = vsel %vm833, %v774, 0.0
      %v1318 = vrot.slane %v1317, 4
      %v1319 = vadd.f32 %v1317, %v1318
      %v1320 = vrot.slane %v1319, 2
      %v1321 = vadd.f32 %v1319, %v1320
      %v1322 = vrot.slane %v1321, 1
      %v1323 = vadd.f32 %v1321, %v1322
      %v1324 = vsel %vm833, %v775, 0.0
      %v1325 = vrot.slane %v1324, 4
      %v1326 = vadd.f32 %v1324, %v1325
      %v1327 = vrot.slane %v1326, 2
      %v1328 = vadd.f32 %v1326, %v1327
      %v1329 = vrot.slane %v1328, 1
      %v1330 = vadd.f32 %v1328, %v1329
      %v1331 = vsel %vm833, %v776, 0.0
      %v1332 = vrot.slane %v1331, 4
      %v1333 = vadd.f32 %v1331, %v1332
      %v1334 = vrot.slane %v1333, 2
      %v1335 = vadd.f32 %v1333, %v1334
      %v1336 = vrot.slane %v1335, 1
      %v1337 = vadd.f32 %v1335, %v1336
      %v1338 = vsel %vm833, %v777, 0.0
      %v1339 = vrot.slane %v1338, 4
      %v1340 = vadd.f32 %v1338, %v1339
      %v1341 = vrot.slane %v1340, 2
      %v1342 = vadd.f32 %v1340, %v1341
      %v1343 = vrot.slane %v1342, 1
      %v1344 = vadd.f32 %v1342, %v1343
      %v1345 = vsel %vm833, %v778, 0.0
      %v1346 = vrot.slane %v1345, 4
      %v1347 = vadd.f32 %v1345, %v1346
      %v1348 = vrot.slane %v1347, 2
      %v1349 = vadd.f32 %v1347, %v1348
      %v1350 = vrot.slane %v1349, 1
      %v1351 = vadd.f32 %v1349, %v1350
      %v1352 = vsel %vm833, %v779, 0.0
      %v1353 = vrot.slane %v1352, 4
      %v1354 = vadd.f32 %v1352, %v1353
      %v1355 = vrot.slane %v1354, 2
      %v1356 = vadd.f32 %v1354, %v1355
      %v1357 = vrot.slane %v1356, 1
      %v1358 = vadd.f32 %v1356, %v1357
      %v1359 = vsel %vm833, %v780, 0.0
      %v1360 = vrot.slane %v1359, 4
      %v1361 = vadd.f32 %v1359, %v1360
      %v1362 = vrot.slane %v1361, 2
      %v1363 = vadd.f32 %v1361, %v1362
      %v1364 = vrot.slane %v1363, 1
      %v1365 = vadd.f32 %v1363, %v1364
      %v1366 = vsel %vm833, %v781, 0.0
      %v1367 = vrot.slane %v1366, 4
      %v1368 = vadd.f32 %v1366, %v1367
      %v1369 = vrot.slane %v1368, 2
      %v1370 = vadd.f32 %v1368, %v1369
      %v1371 = vrot.slane %v1370, 1
      %v1372 = vadd.f32 %v1370, %v1371
      %v1373 = vsel %vm833, %v782, 0.0
      %v1374 = vrot.slane %v1373, 4
      %v1375 = vadd.f32 %v1373, %v1374
      %v1376 = vrot.slane %v1375, 2
      %v1377 = vadd.f32 %v1375, %v1376
      %v1378 = vrot.slane %v1377, 1
      %v1379 = vadd.f32 %v1377, %v1378
      %v1380 = vsel %vm833, %v783, 0.0
      %v1381 = vrot.slane %v1380, 4
      %v1382 = vadd.f32 %v1380, %v1381
      %v1383 = vrot.slane %v1382, 2
      %v1384 = vadd.f32 %v1382, %v1383
      %v1385 = vrot.slane %v1384, 1
      %v1386 = vadd.f32 %v1384, %v1385
      %v1387 = vsel %vm833, %v784, 0.0
      %v1388 = vrot.slane %v1387, 4
      %v1389 = vadd.f32 %v1387, %v1388
      %v1390 = vrot.slane %v1389, 2
      %v1391 = vadd.f32 %v1389, %v1390
      %v1392 = vrot.slane %v1391, 1
      %v1393 = vadd.f32 %v1391, %v1392
      %v1394 = vsel %vm833, %v785, 0.0
      %v1395 = vrot.slane %v1394, 4
      %v1396 = vadd.f32 %v1394, %v1395
      %v1397 = vrot.slane %v1396, 2
      %v1398 = vadd.f32 %v1396, %v1397
      %v1399 = vrot.slane %v1398, 1
      %v1400 = vadd.f32 %v1398, %v1399
      %v1401 = vsel %vm833, %v786, 0.0
      %v1402 = vrot.slane %v1401, 4
      %v1403 = vadd.f32 %v1401, %v1402
      %v1404 = vrot.slane %v1403, 2
      %v1405 = vadd.f32 %v1403, %v1404
      %v1406 = vrot.slane %v1405, 1
      %v1407 = vadd.f32 %v1405, %v1406
      %v1408 = vsel %vm833, %v787, 0.0
      %v1409 = vrot.slane %v1408, 4
      %v1410 = vadd.f32 %v1408, %v1409
      %v1411 = vrot.slane %v1410, 2
      %v1412 = vadd.f32 %v1410, %v1411
      %v1413 = vrot.slane %v1412, 1
      %v1414 = vadd.f32 %v1412, %v1413
      %v1415 = vsel %vm833, %v788, 0.0
      %v1416 = vrot.slane %v1415, 4
      %v1417 = vadd.f32 %v1415, %v1416
      %v1418 = vrot.slane %v1417, 2
      %v1419 = vadd.f32 %v1417, %v1418
      %v1420 = vrot.slane %v1419, 1
      %v1421 = vadd.f32 %v1419, %v1420
      %v1422 = vsel %vm833, %v789, 0.0
      %v1423 = vrot.slane %v1422, 4
      %v1424 = vadd.f32 %v1422, %v1423
      %v1425 = vrot.slane %v1424, 2
      %v1426 = vadd.f32 %v1424, %v1425
      %v1427 = vrot.slane %v1426, 1
      %v1428 = vadd.f32 %v1426, %v1427
      %v1429 = vsel %vm833, %v790, 0.0
      %v1430 = vrot.slane %v1429, 4
      %v1431 = vadd.f32 %v1429, %v1430
      %v1432 = vrot.slane %v1431, 2
      %v1433 = vadd.f32 %v1431, %v1432
      %v1434 = vrot.slane %v1433, 1
      %v1435 = vadd.f32 %v1433, %v1434
      %v1436 = vsel %vm833, %v791, 0.0
      %v1437 = vrot.slane %v1436, 4
      %v1438 = vadd.f32 %v1436, %v1437
      %v1439 = vrot.slane %v1438, 2
      %v1440 = vadd.f32 %v1438, %v1439
      %v1441 = vrot.slane %v1440, 1
      %v1442 = vadd.f32 %v1440, %v1441
      %v1443 = vsel %vm833, %v792, 0.0
      %v1444 = vrot.slane %v1443, 4
      %v1445 = vadd.f32 %v1443, %v1444
      %v1446 = vrot.slane %v1445, 2
      %v1447 = vadd.f32 %v1445, %v1446
      %v1448 = vrot.slane %v1447, 1
      %v1449 = vadd.f32 %v1447, %v1448
      %v1450 = vsel %vm833, %v793, 0.0
      %v1451 = vrot.slane %v1450, 4
      %v1452 = vadd.f32 %v1450, %v1451
      %v1453 = vrot.slane %v1452, 2
      %v1454 = vadd.f32 %v1452, %v1453
      %v1455 = vrot.slane %v1454, 1
      %v1456 = vadd.f32 %v1454, %v1455
      %v1457 = vsel %vm833, %v794, 0.0
      %v1458 = vrot.slane %v1457, 4
      %v1459 = vadd.f32 %v1457, %v1458
      %v1460 = vrot.slane %v1459, 2
      %v1461 = vadd.f32 %v1459, %v1460
      %v1462 = vrot.slane %v1461, 1
      %v1463 = vadd.f32 %v1461, %v1462
      %v1464 = vsel %vm833, %v795, 0.0
      %v1465 = vrot.slane %v1464, 4
      %v1466 = vadd.f32 %v1464, %v1465
      %v1467 = vrot.slane %v1466, 2
      %v1468 = vadd.f32 %v1466, %v1467
      %v1469 = vrot.slane %v1468, 1
      %v1470 = vadd.f32 %v1468, %v1469
      %v1471 = vsel %vm833, %v796, 0.0
      %v1472 = vrot.slane %v1471, 4
      %v1473 = vadd.f32 %v1471, %v1472
      %v1474 = vrot.slane %v1473, 2
      %v1475 = vadd.f32 %v1473, %v1474
      %v1476 = vrot.slane %v1475, 1
      %v1477 = vadd.f32 %v1475, %v1476
      %v1478 = vsel %vm833, %v797, 0.0
      %v1479 = vrot.slane %v1478, 4
      %v1480 = vadd.f32 %v1478, %v1479
      %v1481 = vrot.slane %v1480, 2
      %v1482 = vadd.f32 %v1480, %v1481
      %v1483 = vrot.slane %v1482, 1
      %v1484 = vadd.f32 %v1482, %v1483
      %v1485 = vsel %vm833, %v798, 0.0
      %v1486 = vrot.slane %v1485, 4
      %v1487 = vadd.f32 %v1485, %v1486
      %v1488 = vrot.slane %v1487, 2
      %v1489 = vadd.f32 %v1487, %v1488
      %v1490 = vrot.slane %v1489, 1
      %v1491 = vadd.f32 %v1489, %v1490
      %v1492 = vsel %vm833, %v799, 0.0
      %v1493 = vrot.slane %v1492, 4
      %v1494 = vadd.f32 %v1492, %v1493
      %v1495 = vrot.slane %v1494, 2
      %v1496 = vadd.f32 %v1494, %v1495
      %v1497 = vrot.slane %v1496, 1
      %v1498 = vadd.f32 %v1496, %v1497
      %v1499 = vsel %vm833, %v800, 0.0
      %v1500 = vrot.slane %v1499, 4
      %v1501 = vadd.f32 %v1499, %v1500
      %v1502 = vrot.slane %v1501, 2
      %v1503 = vadd.f32 %v1501, %v1502
      %v1504 = vrot.slane %v1503, 1
      %v1505 = vadd.f32 %v1503, %v1504
      %v1506 = vsel %vm833, %v801, 0.0
      %v1507 = vrot.slane %v1506, 4
      %v1508 = vadd.f32 %v1506, %v1507
      %v1509 = vrot.slane %v1508, 2
      %v1510 = vadd.f32 %v1508, %v1509
      %v1511 = vrot.slane %v1510, 1
      %v1512 = vadd.f32 %v1510, %v1511
      %v1513 = vsel %vm833, %v802, 0.0
      %v1514 = vrot.slane %v1513, 4
      %v1515 = vadd.f32 %v1513, %v1514
      %v1516 = vrot.slane %v1515, 2
      %v1517 = vadd.f32 %v1515, %v1516
      %v1518 = vrot.slane %v1517, 1
      %v1519 = vadd.f32 %v1517, %v1518
      %v1520 = vsel %vm833, %v803, 0.0
      %v1521 = vrot.slane %v1520, 4
      %v1522 = vadd.f32 %v1520, %v1521
      %v1523 = vrot.slane %v1522, 2
      %v1524 = vadd.f32 %v1522, %v1523
      %v1525 = vrot.slane %v1524, 1
      %v1526 = vadd.f32 %v1524, %v1525
      %v1527 = vsel %vm833, %v804, 0.0
      %v1528 = vrot.slane %v1527, 4
      %v1529 = vadd.f32 %v1527, %v1528
      %v1530 = vrot.slane %v1529, 2
      %v1531 = vadd.f32 %v1529, %v1530
      %v1532 = vrot.slane %v1531, 1
      %v1533 = vadd.f32 %v1531, %v1532
      %v1534 = vsel %vm833, %v805, 0.0
      %v1535 = vrot.slane %v1534, 4
      %v1536 = vadd.f32 %v1534, %v1535
      %v1537 = vrot.slane %v1536, 2
      %v1538 = vadd.f32 %v1536, %v1537
      %v1539 = vrot.slane %v1538, 1
      %v1540 = vadd.f32 %v1538, %v1539
      %v1541 = vsel %vm833, %v806, 0.0
      %v1542 = vrot.slane %v1541, 4
      %v1543 = vadd.f32 %v1541, %v1542
      %v1544 = vrot.slane %v1543, 2
      %v1545 = vadd.f32 %v1543, %v1544
      %v1546 = vrot.slane %v1545, 1
      %v1547 = vadd.f32 %v1545, %v1546
      %v1548 = vsel %vm833, %v807, 0.0
      %v1549 = vrot.slane %v1548, 4
      %v1550 = vadd.f32 %v1548, %v1549
      %v1551 = vrot.slane %v1550, 2
      %v1552 = vadd.f32 %v1550, %v1551
      %v1553 = vrot.slane %v1552, 1
      %v1554 = vadd.f32 %v1552, %v1553
      %v1555 = vsel %vm833, %v808, 0.0
      %v1556 = vrot.slane %v1555, 4
      %v1557 = vadd.f32 %v1555, %v1556
      %v1558 = vrot.slane %v1557, 2
      %v1559 = vadd.f32 %v1557, %v1558
      %v1560 = vrot.slane %v1559, 1
      %v1561 = vadd.f32 %v1559, %v1560
      %v1562 = vsel %vm833, %v809, 0.0
      %v1563 = vrot.slane %v1562, 4
      %v1564 = vadd.f32 %v1562, %v1563
      %v1565 = vrot.slane %v1564, 2
      %v1566 = vadd.f32 %v1564, %v1565
      %v1567 = vrot.slane %v1566, 1
      %v1568 = vadd.f32 %v1566, %v1567
      %v1569 = vsel %vm833, %v810, 0.0
      %v1570 = vrot.slane %v1569, 4
      %v1571 = vadd.f32 %v1569, %v1570
      %v1572 = vrot.slane %v1571, 2
      %v1573 = vadd.f32 %v1571, %v1572
      %v1574 = vrot.slane %v1573, 1
      %v1575 = vadd.f32 %v1573, %v1574
      %v1576 = vsel %vm833, %v811, 0.0
      %v1577 = vrot.slane %v1576, 4
      %v1578 = vadd.f32 %v1576, %v1577
      %v1579 = vrot.slane %v1578, 2
      %v1580 = vadd.f32 %v1578, %v1579
      %v1581 = vrot.slane %v1580, 1
      %v1582 = vadd.f32 %v1580, %v1581
      %v1583 = vsel %vm833, %v812, 0.0
      %v1584 = vrot.slane %v1583, 4
      %v1585 = vadd.f32 %v1583, %v1584
      %v1586 = vrot.slane %v1585, 2
      %v1587 = vadd.f32 %v1585, %v1586
      %v1588 = vrot.slane %v1587, 1
      %v1589 = vadd.f32 %v1587, %v1588
      %v1590 = vsel %vm833, %v813, 0.0
      %v1591 = vrot.slane %v1590, 4
      %v1592 = vadd.f32 %v1590, %v1591
      %v1593 = vrot.slane %v1592, 2
      %v1594 = vadd.f32 %v1592, %v1593
      %v1595 = vrot.slane %v1594, 1
      %v1596 = vadd.f32 %v1594, %v1595
      %v1597 = vsel %vm833, %v814, 0.0
      %v1598 = vrot.slane %v1597, 4
      %v1599 = vadd.f32 %v1597, %v1598
      %v1600 = vrot.slane %v1599, 2
      %v1601 = vadd.f32 %v1599, %v1600
      %v1602 = vrot.slane %v1601, 1
      %v1603 = vadd.f32 %v1601, %v1602
      %v1604 = vsel %vm833, %v815, 0.0
      %v1605 = vrot.slane %v1604, 4
      %v1606 = vadd.f32 %v1604, %v1605
      %v1607 = vrot.slane %v1606, 2
      %v1608 = vadd.f32 %v1606, %v1607
      %v1609 = vrot.slane %v1608, 1
      %v1610 = vadd.f32 %v1608, %v1609
      %v1611 = vsel %vm833, %v816, 0.0
      %v1612 = vrot.slane %v1611, 4
      %v1613 = vadd.f32 %v1611, %v1612
      %v1614 = vrot.slane %v1613, 2
      %v1615 = vadd.f32 %v1613, %v1614
      %v1616 = vrot.slane %v1615, 1
      %v1617 = vadd.f32 %v1615, %v1616
      %v1618 = vsel %vm833, %v817, 0.0
      %v1619 = vrot.slane %v1618, 4
      %v1620 = vadd.f32 %v1618, %v1619
      %v1621 = vrot.slane %v1620, 2
      %v1622 = vadd.f32 %v1620, %v1621
      %v1623 = vrot.slane %v1622, 1
      %v1624 = vadd.f32 %v1622, %v1623
      %v1625 = vsel %vm833, %v818, 0.0
      %v1626 = vrot.slane %v1625, 4
      %v1627 = vadd.f32 %v1625, %v1626
      %v1628 = vrot.slane %v1627, 2
      %v1629 = vadd.f32 %v1627, %v1628
      %v1630 = vrot.slane %v1629, 1
      %v1631 = vadd.f32 %v1629, %v1630
      %v1632 = vsel %vm833, %v819, 0.0
      %v1633 = vrot.slane %v1632, 4
      %v1634 = vadd.f32 %v1632, %v1633
      %v1635 = vrot.slane %v1634, 2
      %v1636 = vadd.f32 %v1634, %v1635
      %v1637 = vrot.slane %v1636, 1
      %v1638 = vadd.f32 %v1636, %v1637
      %v1639 = vsel %vm833, %v820, 0.0
      %v1640 = vrot.slane %v1639, 4
      %v1641 = vadd.f32 %v1639, %v1640
      %v1642 = vrot.slane %v1641, 2
      %v1643 = vadd.f32 %v1641, %v1642
      %v1644 = vrot.slane %v1643, 1
      %v1645 = vadd.f32 %v1643, %v1644
      %v1646 = vsel %vm833, %v821, 0.0
      %v1647 = vrot.slane %v1646, 4
      %v1648 = vadd.f32 %v1646, %v1647
      %v1649 = vrot.slane %v1648, 2
      %v1650 = vadd.f32 %v1648, %v1649
      %v1651 = vrot.slane %v1650, 1
      %v1652 = vadd.f32 %v1650, %v1651
      %v1653 = vsel %vm833, %v822, 0.0
      %v1654 = vrot.slane %v1653, 4
      %v1655 = vadd.f32 %v1653, %v1654
      %v1656 = vrot.slane %v1655, 2
      %v1657 = vadd.f32 %v1655, %v1656
      %v1658 = vrot.slane %v1657, 1
      %v1659 = vadd.f32 %v1657, %v1658
      %v1660 = vsel %vm833, %v823, 0.0
      %v1661 = vrot.slane %v1660, 4
      %v1662 = vadd.f32 %v1660, %v1661
      %v1663 = vrot.slane %v1662, 2
      %v1664 = vadd.f32 %v1662, %v1663
      %v1665 = vrot.slane %v1664, 1
      %v1666 = vadd.f32 %v1664, %v1665
      %v1667 = vsel %vm833, %v824, 0.0
      %v1668 = vrot.slane %v1667, 4
      %v1669 = vadd.f32 %v1667, %v1668
      %v1670 = vrot.slane %v1669, 2
      %v1671 = vadd.f32 %v1669, %v1670
      %v1672 = vrot.slane %v1671, 1
      %v1673 = vadd.f32 %v1671, %v1672
      %v1674 = vsel %vm833, %v825, 0.0
      %v1675 = vrot.slane %v1674, 4
      %v1676 = vadd.f32 %v1674, %v1675
      %v1677 = vrot.slane %v1676, 2
      %v1678 = vadd.f32 %v1676, %v1677
      %v1679 = vrot.slane %v1678, 1
      %v1680 = vadd.f32 %v1678, %v1679
      %v1681 = vsel %vm833, %v826, 0.0
      %v1682 = vrot.slane %v1681, 4
      %v1683 = vadd.f32 %v1681, %v1682
      %v1684 = vrot.slane %v1683, 2
      %v1685 = vadd.f32 %v1683, %v1684
      %v1686 = vrot.slane %v1685, 1
      %v1687 = vadd.f32 %v1685, %v1686
      %v1688 = vsel %vm833, %v827, 0.0
      %v1689 = vrot.slane %v1688, 4
      %v1690 = vadd.f32 %v1688, %v1689
      %v1691 = vrot.slane %v1690, 2
      %v1692 = vadd.f32 %v1690, %v1691
      %v1693 = vrot.slane %v1692, 1
      %v1694 = vadd.f32 %v1692, %v1693
      %v1695 = vsel %vm833, %v828, 0.0
      %v1696 = vrot.slane %v1695, 4
      %v1697 = vadd.f32 %v1695, %v1696
      %v1698 = vrot.slane %v1697, 2
      %v1699 = vadd.f32 %v1697, %v1698
      %v1700 = vrot.slane %v1699, 1
      %v1701 = vadd.f32 %v1699, %v1700
      %v1702 = vsel %vm833, %v829, 0.0
      %v1703 = vrot.slane %v1702, 4
      %v1704 = vadd.f32 %v1702, %v1703
      %v1705 = vrot.slane %v1704, 2
      %v1706 = vadd.f32 %v1704, %v1705
      %v1707 = vrot.slane %v1706, 1
      %v1708 = vadd.f32 %v1706, %v1707
      %v1709 = vsel %vm833, %v830, 0.0
      %v1710 = vrot.slane %v1709, 4
      %v1711 = vadd.f32 %v1709, %v1710
      %v1712 = vrot.slane %v1711, 2
      %v1713 = vadd.f32 %v1711, %v1712
      %v1714 = vrot.slane %v1713, 1
      %v1715 = vadd.f32 %v1713, %v1714
      %v1716 = vsel %vm833, %v831, 0.0
      %v1717 = vrot.slane %v1716, 4
      %v1718 = vadd.f32 %v1716, %v1717
      %v1719 = vrot.slane %v1718, 2
      %v1720 = vadd.f32 %v1718, %v1719
      %v1721 = vrot.slane %v1720, 1
      %v1722 = vadd.f32 %v1720, %v1721
      %v1723 = vsel %vm833, %v832, 0.0
      %v1724 = vrot.slane %v1723, 4
      %v1725 = vadd.f32 %v1723, %v1724
      %v1726 = vrot.slane %v1725, 2
      %v1727 = vadd.f32 %v1725, %v1726
      %v1728 = vrot.slane %v1727, 1
      %v1729 = vadd.f32 %v1727, %v1728
      %v1730 = vld [vmem:[%s551] sm:$0xff]
      %v1731 = vld [vmem:[%s551 + $0x8] sm:$0xff]
      %v1732 = vld [vmem:[%s551 + $0x10] sm:$0xff]
      %v1733 = vld [vmem:[%s551 + $0x18] sm:$0xff]
      %v1734 = vld [vmem:[%s551 + $0x20] sm:$0xff]
      %v1735 = vld [vmem:[%s551 + $0x28] sm:$0xff]
      %v1736 = vld [vmem:[%s551 + $0x30] sm:$0xff]
      %v1737 = vld [vmem:[%s551 + $0x38] sm:$0xff]
      %v1738 = vld [vmem:[%s551 + $0x40] sm:$0xff]
      %v1739 = vld [vmem:[%s551 + $0x48] sm:$0xff]
      %v1740 = vld [vmem:[%s551 + $0x50] sm:$0xff]
      %v1741 = vld [vmem:[%s551 + $0x58] sm:$0xff]
      %v1742 = vld [vmem:[%s551 + $0x60] sm:$0xff]
      %v1743 = vld [vmem:[%s551 + $0x68] sm:$0xff]
      %v1744 = vld [vmem:[%s551 + $0x70] sm:$0xff]
      %v1745 = vld [vmem:[%s551 + $0x78] sm:$0xff]
      %v1746 = vld [vmem:[%s4] sm:$0xff]
      %v1747 = vld [vmem:[%s4 + $0x8] sm:$0xff]
      %v1748 = vld [vmem:[%s4 + $0x10] sm:$0xff]
      %v1749 = vld [vmem:[%s4 + $0x18] sm:$0xff]
      %v1750 = vld [vmem:[%s4 + $0x20] sm:$0xff]
      %v1751 = vld [vmem:[%s4 + $0x28] sm:$0xff]
      %v1752 = vld [vmem:[%s4 + $0x30] sm:$0xff]
      %v1753 = vld [vmem:[%s4 + $0x38] sm:$0xff]
      %v1754 = vld [vmem:[%s557] sm:$0xff]
      %v1755 = vld [vmem:[%s557 + $0x8] sm:$0xff]
      %v1756 = vld [vmem:[%s557 + $0x10] sm:$0xff]
      %v1757 = vld [vmem:[%s557 + $0x18] sm:$0xff]
      %v1758 = vld [vmem:[%s557 + $0x20] sm:$0xff]
      %v1759 = vld [vmem:[%s557 + $0x28] sm:$0xff]
      %v1760 = vld [vmem:[%s557 + $0x30] sm:$0xff]
      %v1761 = vld [vmem:[%s557 + $0x38] sm:$0xff]
      %v1762 = vld [vmem:[%s557 + $0x40] sm:$0xff]
      %v1763 = vld [vmem:[%s557 + $0x48] sm:$0xff]
      %v1764 = vld [vmem:[%s557 + $0x50] sm:$0xff]
      %v1765 = vld [vmem:[%s557 + $0x58] sm:$0xff]
      %v1766 = vld [vmem:[%s557 + $0x60] sm:$0xff]
      %v1767 = vld [vmem:[%s557 + $0x68] sm:$0xff]
      %v1768 = vld [vmem:[%s557 + $0x70] sm:$0xff]
      %v1769 = vld [vmem:[%s557 + $0x78] sm:$0xff]
      %v1770 = vld [vmem:[%s5] sm:$0xff]
      %v1771 = vld [vmem:[%s5 + $0x8] sm:$0xff]
      %v1772 = vld [vmem:[%s5 + $0x10] sm:$0xff]
      %v1773 = vld [vmem:[%s5 + $0x18] sm:$0xff]
      %v1774 = vld [vmem:[%s5 + $0x20] sm:$0xff]
      %v1775 = vld [vmem:[%s5 + $0x28] sm:$0xff]
      %v1776 = vld [vmem:[%s5 + $0x30] sm:$0xff]
      %v1777 = vld [vmem:[%s5 + $0x38] sm:$0xff]
      %vm1778 = vcmask 523264
      %v1780 = vsel %vm1778, %v1754, 0
      %v1783 = vsel %vm1778, %v1755, 0
      %v1786 = vsel %vm1778, %v1756, 0
      %v1789 = vsel %vm1778, %v1757, 0
      %v1792 = vsel %vm1778, %v1758, 0
      %v1795 = vsel %vm1778, %v1759, 0
      %v1798 = vsel %vm1778, %v1760, 0
      %v1801 = vsel %vm1778, %v1761, 0
      %v1804 = vsel %vm1778, %v1762, 0
      %v1807 = vsel %vm1778, %v1763, 0
      %v1810 = vsel %vm1778, %v1764, 0
      %v1813 = vsel %vm1778, %v1765, 0
      %v1816 = vsel %vm1778, %v1766, 0
      %v1819 = vsel %vm1778, %v1767, 0
      %v1822 = vsel %vm1778, %v1768, 0
      %v1825 = vsel %vm1778, %v1769, 0
      %1827 = vmatprep.subr.mxu0 0.0
      %1828 = vmatpush1.msra.mxu0 %v1770
      %1829 = vmatprep.subr.mxu0 0.0
      %1830 = vmatpush1.msra.mxu0 %v1771
      %1831 = vmatprep.subr.mxu0 0.0
      %1832 = vmatpush1.msra.mxu0 %v1772
      %1833 = vmatprep.subr.mxu0 0.0
      %1834 = vmatpush1.msra.mxu0 %v1773
      %1835 = vmatprep.subr.mxu0 0.0
      %1836 = vmatpush1.msra.mxu0 %v1774
      %1837 = vmatprep.subr.mxu0 0.0
      %1838 = vmatpush1.msra.mxu0 %v1775
      %1839 = vmatprep.subr.mxu0 0.0
      %1840 = vmatpush1.msra.mxu0 %v1776
      %1841 = vmatprep.subr.mxu0 0.0
      %1842 = vmatpush1.msra.mxu0 %v1777
      %1843 = vmatprep.subr.mxu0 0.0
      %1844 = vmatpush1.msra.mxu0 0.0
      %1845 = vmatprep.subr.mxu0 0.0
      %1846 = vmatpush1.msra.mxu0 0.0
      %1847 = vmatprep.subr.mxu0 0.0
      %1848 = vmatpush1.msra.mxu0 0.0
      %1849 = vmatprep.subr.mxu0 0.0
      %1850 = vmatpush1.msra.mxu0 0.0
      %1851 = vmatprep.subr.mxu0 0.0
      %1852 = vmatpush1.msra.mxu0 0.0
      %1853 = vmatprep.subr.mxu0 0.0
      %1854 = vmatpush1.msra.mxu0 0.0
      %1855 = vmatprep.subr.mxu0 0.0
      %1856 = vmatpush1.msra.mxu0 0.0
      %1857 = vmatprep.subr.mxu0 0.0
      %1858 = vmatpush1.msra.mxu0 0.0
      %1859 = vmatprep.subr.mxu0 0.0
      %1860 = vmatpush1.msra.mxu0 0.0
      %1861 = vmatprep.subr.mxu0 0.0
      %1862 = vmatpush1.msra.mxu0 0.0
      %1863 = vmatprep.subr.mxu0 0.0
      %1864 = vmatpush1.msra.mxu0 0.0
      %1865 = vmatprep.subr.mxu0 0.0
      %1866 = vmatpush1.msra.mxu0 0.0
      %1867 = vmatprep.subr.mxu0 0.0
      %1868 = vmatpush1.msra.mxu0 0.0
      %1869 = vmatprep.subr.mxu0 0.0
      %1870 = vmatpush1.msra.mxu0 0.0
      %1871 = vmatprep.subr.mxu0 0.0
      %1872 = vmatpush1.msra.mxu0 0.0
      %1873 = vmatprep.subr.mxu0 0.0
      %1874 = vmatpush1.msra.mxu0 0.0
      %1875 = vmatprep.subr.mxu0 0.0
      %1876 = vmatpush1.msra.mxu0 0.0
      %1877 = vmatprep.subr.mxu0 0.0
      %1878 = vmatpush1.msra.mxu0 0.0
      %1879 = vmatprep.subr.mxu0 0.0
      %1880 = vmatpush1.msra.mxu0 0.0
      %1881 = vmatprep.subr.mxu0 0.0
      %1882 = vmatpush1.msra.mxu0 0.0
      %1883 = vmatprep.subr.mxu0 0.0
      %1884 = vmatpush1.msra.mxu0 0.0
      %1885 = vmatprep.subr.mxu0 0.0
      %1886 = vmatpush1.msra.mxu0 0.0
      %1887 = vmatprep.subr.mxu0 0.0
      %1888 = vmatpush1.msra.mxu0 0.0
      %1889 = vmatprep.subr.mxu0 0.0
      %1890 = vmatpush1.msra.mxu0 0.0
      %1891 = vmatprep.mubr.f32.mxu0 0.0
      %1892 = vmatmul.mubr.f32.gmra.mrb[0].mxu0 %v1780
      %v1893 = vpop.f32.mrb[0].mxu0
      %v1894 = vadd.f32 0.0, %v1893
      %v1895 = vpop.f32.mrb[0].mxu0
      %1896 = vmatprep.mubr.f32.mxu0 0.0
      %1897 = vmatmul.mubr.f32.gmra.mrb[0].mxu0 %v1783
      %v1898 = vpop.f32.mrb[0].mxu0
      %v1899 = vadd.f32 0.0, %v1898
      %v1900 = vpop.f32.mrb[0].mxu0
      %1901 = vmatprep.mubr.f32.mxu0 0.0
      %1902 = vmatmul.mubr.f32.gmra.mrb[0].mxu0 %v1786
      %v1903 = vpop.f32.mrb[0].mxu0
      %v1904 = vadd.f32 0.0, %v1903
      %v1905 = vpop.f32.mrb[0].mxu0
      %1906 = vmatprep.mubr.f32.mxu0 0.0
      %1907 = vmatmul.mubr.f32.gmra.mrb[0].mxu0 %v1789
      %v1908 = vpop.f32.mrb[0].mxu0
      %v1909 = vadd.f32 0.0, %v1908
      %v1910 = vpop.f32.mrb[0].mxu0
      %1911 = vmatprep.mubr.f32.mxu0 0.0
      %1912 = vmatmul.mubr.f32.gmra.mrb[0].mxu0 %v1792
      %v1913 = vpop.f32.mrb[0].mxu0
      %v1914 = vadd.f32 0.0, %v1913
      %v1915 = vpop.f32.mrb[0].mxu0
      %1916 = vmatprep.mubr.f32.mxu0 0.0
      %1917 = vmatmul.mubr.f32.gmra.mrb[0].mxu0 %v1795
      %v1918 = vpop.f32.mrb[0].mxu0
      %v1919 = vadd.f32 0.0, %v1918
      %v1920 = vpop.f32.mrb[0].mxu0
      %1921 = vmatprep.mubr.f32.mxu0 0.0
      %1922 = vmatmul.mubr.f32.gmra.mrb[0].mxu0 %v1798
      %v1923 = vpop.f32.mrb[0].mxu0
      %v1924 = vadd.f32 0.0, %v1923
      %v1925 = vpop.f32.mrb[0].mxu0
      %1926 = vmatprep.mubr.f32.mxu0 0.0
      %1927 = vmatmul.mubr.f32.gmra.mrb[0].mxu0 %v1801
      %v1928 = vpop.f32.mrb[0].mxu0
      %v1929 = vadd.f32 0.0, %v1928
      %v1930 = vpop.f32.mrb[0].mxu0
      %1931 = vmatprep.mubr.f32.mxu0 0.0
      %1932 = vmatmul.mubr.f32.gmra.mrb[0].mxu0 %v1804
      %v1933 = vpop.f32.mrb[0].mxu0
      %v1934 = vadd.f32 0.0, %v1933
      %v1935 = vpop.f32.mrb[0].mxu0
      %1936 = vmatprep.mubr.f32.mxu0 0.0
      %1937 = vmatmul.mubr.f32.gmra.mrb[0].mxu0 %v1807
      %v1938 = vpop.f32.mrb[0].mxu0
      %v1939 = vadd.f32 0.0, %v1938
      %v1940 = vpop.f32.mrb[0].mxu0
      %1941 = vmatprep.mubr.f32.mxu0 0.0
      %1942 = vmatmul.mubr.f32.gmra.mrb[0].mxu0 %v1810
      %v1943 = vpop.f32.mrb[0].mxu0
      %v1944 = vadd.f32 0.0, %v1943
      %v1945 = vpop.f32.mrb[0].mxu0
      %1946 = vmatprep.mubr.f32.mxu0 0.0
      %1947 = vmatmul.mubr.f32.gmra.mrb[0].mxu0 %v1813
      %v1948 = vpop.f32.mrb[0].mxu0
      %v1949 = vadd.f32 0.0, %v1948
      %v1950 = vpop.f32.mrb[0].mxu0
      %1951 = vmatprep.mubr.f32.mxu0 0.0
      %1952 = vmatmul.mubr.f32.gmra.mrb[0].mxu0 %v1816
      %v1953 = vpop.f32.mrb[0].mxu0
      %v1954 = vadd.f32 0.0, %v1953
      %v1955 = vpop.f32.mrb[0].mxu0
      %1956 = vmatprep.mubr.f32.mxu0 0.0
      %1957 = vmatmul.mubr.f32.gmra.mrb[0].mxu0 %v1819
      %v1958 = vpop.f32.mrb[0].mxu0
      %v1959 = vadd.f32 0.0, %v1958
      %v1960 = vpop.f32.mrb[0].mxu0
      %1961 = vmatprep.mubr.f32.mxu0 0.0
      %1962 = vmatmul.mubr.f32.gmra.mrb[0].mxu0 %v1822
      %v1963 = vpop.f32.mrb[0].mxu0
      %v1964 = vadd.f32 0.0, %v1963
      %v1965 = vpop.f32.mrb[0].mxu0
      %1966 = vmatprep.mubr.f32.mxu0 0.0
      %1967 = vmatmul.mubr.f32.gmra.mrb[0].mxu0 %v1825
      %v1968 = vpop.f32.mrb[0].mxu0
      %v1969 = vadd.f32 0.0, %v1968
      %v1970 = vpop.f32.mrb[0].mxu0
      %1971 = vdwg.mxu0
      %v1973 = vsel %vm1778, %v1730, 0
      %v1976 = vsel %vm1778, %v1731, 0
      %v1979 = vsel %vm1778, %v1732, 0
      %v1982 = vsel %vm1778, %v1733, 0
      %v1985 = vsel %vm1778, %v1734, 0
      %v1988 = vsel %vm1778, %v1735, 0
      %v1991 = vsel %vm1778, %v1736, 0
      %v1994 = vsel %vm1778, %v1737, 0
      %v1997 = vsel %vm1778, %v1738, 0
      %v2000 = vsel %vm1778, %v1739, 0
      %v2003 = vsel %vm1778, %v1740, 0
      %v2006 = vsel %vm1778, %v1741, 0
      %v2009 = vsel %vm1778, %v1742, 0
      %v2012 = vsel %vm1778, %v1743, 0
      %v2015 = vsel %vm1778, %v1744, 0
      %v2018 = vsel %vm1778, %v1745, 0
      %2020 = vmatprep.subr.mxu0 0.0
      %2021 = vmatpush1.msra.mxu0 %v1746
      %2022 = vmatprep.subr.mxu0 0.0
      %2023 = vmatpush1.msra.mxu0 %v1747
      %2024 = vmatprep.subr.mxu0 0.0
      %2025 = vmatpush1.msra.mxu0 %v1748
      %2026 = vmatprep.subr.mxu0 0.0
      %2027 = vmatpush1.msra.mxu0 %v1749
      %2028 = vmatprep.subr.mxu0 0.0
      %2029 = vmatpush1.msra.mxu0 %v1750
      %2030 = vmatprep.subr.mxu0 0.0
      %2031 = vmatpush1.msra.mxu0 %v1751
      %2032 = vmatprep.subr.mxu0 0.0
      %2033 = vmatpush1.msra.mxu0 %v1752
      %2034 = vmatprep.subr.mxu0 0.0
      %2035 = vmatpush1.msra.mxu0 %v1753
      %2036 = vmatprep.subr.mxu0 0.0
      %2037 = vmatpush1.msra.mxu0 0.0
      %2038 = vmatprep.subr.mxu0 0.0
      %2039 = vmatpush1.msra.mxu0 0.0
      %2040 = vmatprep.subr.mxu0 0.0
      %2041 = vmatpush1.msra.mxu0 0.0
      %2042 = vmatprep.subr.mxu0 0.0
      %2043 = vmatpush1.msra.mxu0 0.0
      %2044 = vmatprep.subr.mxu0 0.0
      %2045 = vmatpush1.msra.mxu0 0.0
      %2046 = vmatprep.subr.mxu0 0.0
      %2047 = vmatpush1.msra.mxu0 0.0
      %2048 = vmatprep.subr.mxu0 0.0
      %2049 = vmatpush1.msra.mxu0 0.0
      %2050 = vmatprep.subr.mxu0 0.0
      %2051 = vmatpush1.msra.mxu0 0.0
      %2052 = vmatprep.subr.mxu0 0.0
      %2053 = vmatpush1.msra.mxu0 0.0
      %2054 = vmatprep.subr.mxu0 0.0
      %2055 = vmatpush1.msra.mxu0 0.0
      %2056 = vmatprep.subr.mxu0 0.0
      %2057 = vmatpush1.msra.mxu0 0.0
      %2058 = vmatprep.subr.mxu0 0.0
      %2059 = vmatpush1.msra.mxu0 0.0
      %2060 = vmatprep.subr.mxu0 0.0
      %2061 = vmatpush1.msra.mxu0 0.0
      %2062 = vmatprep.subr.mxu0 0.0
      %2063 = vmatpush1.msra.mxu0 0.0
      %2064 = vmatprep.subr.mxu0 0.0
      %2065 = vmatpush1.msra.mxu0 0.0
      %2066 = vmatprep.subr.mxu0 0.0
      %2067 = vmatpush1.msra.mxu0 0.0
      %2068 = vmatprep.subr.mxu0 0.0
      %2069 = vmatpush1.msra.mxu0 0.0
      %2070 = vmatprep.subr.mxu0 0.0
      %2071 = vmatpush1.msra.mxu0 0.0
      %2072 = vmatprep.subr.mxu0 0.0
      %2073 = vmatpush1.msra.mxu0 0.0
      %2074 = vmatprep.subr.mxu0 0.0
      %2075 = vmatpush1.msra.mxu0 0.0
      %2076 = vmatprep.subr.mxu0 0.0
      %2077 = vmatpush1.msra.mxu0 0.0
      %2078 = vmatprep.subr.mxu0 0.0
      %2079 = vmatpush1.msra.mxu0 0.0
      %2080 = vmatprep.subr.mxu0 0.0
      %2081 = vmatpush1.msra.mxu0 0.0
      %2082 = vmatprep.subr.mxu0 0.0
      %2083 = vmatpush1.msra.mxu0 0.0
      %2084 = vmatprep.mubr.f32.mxu0 0.0
      %2085 = vmatmul.mubr.f32.gmra.mrb[0].mxu0 %v1973
      %v2086 = vpop.f32.mrb[0].mxu0
      %v2087 = vadd.f32 %v1894, %v2086
      %v2088 = vpop.f32.mrb[0].mxu0
      %2089 = vmatprep.mubr.f32.mxu0 0.0
      %2090 = vmatmul.mubr.f32.gmra.mrb[0].mxu0 %v1976
      %v2091 = vpop.f32.mrb[0].mxu0
      %v2092 = vadd.f32 %v1899, %v2091
      %v2093 = vpop.f32.mrb[0].mxu0
      %2094 = vmatprep.mubr.f32.mxu0 0.0
      %2095 = vmatmul.mubr.f32.gmra.mrb[0].mxu0 %v1979
      %v2096 = vpop.f32.mrb[0].mxu0
      %v2097 = vadd.f32 %v1904, %v2096
      %v2098 = vpop.f32.mrb[0].mxu0
      %2099 = vmatprep.mubr.f32.mxu0 0.0
      %2100 = vmatmul.mubr.f32.gmra.mrb[0].mxu0 %v1982
      %v2101 = vpop.f32.mrb[0].mxu0
      %v2102 = vadd.f32 %v1909, %v2101
      %v2103 = vpop.f32.mrb[0].mxu0
      %2104 = vmatprep.mubr.f32.mxu0 0.0
      %2105 = vmatmul.mubr.f32.gmra.mrb[0].mxu0 %v1985
      %v2106 = vpop.f32.mrb[0].mxu0
      %v2107 = vadd.f32 %v1914, %v2106
      %v2108 = vpop.f32.mrb[0].mxu0
      %2109 = vmatprep.mubr.f32.mxu0 0.0
      %2110 = vmatmul.mubr.f32.gmra.mrb[0].mxu0 %v1988
      %v2111 = vpop.f32.mrb[0].mxu0
      %v2112 = vadd.f32 %v1919, %v2111
      %v2113 = vpop.f32.mrb[0].mxu0
      %2114 = vmatprep.mubr.f32.mxu0 0.0
      %2115 = vmatmul.mubr.f32.gmra.mrb[0].mxu0 %v1991
      %v2116 = vpop.f32.mrb[0].mxu0
      %v2117 = vadd.f32 %v1924, %v2116
      %v2118 = vpop.f32.mrb[0].mxu0
      %2119 = vmatprep.mubr.f32.mxu0 0.0
      %2120 = vmatmul.mubr.f32.gmra.mrb[0].mxu0 %v1994
      %v2121 = vpop.f32.mrb[0].mxu0
      %v2122 = vadd.f32 %v1929, %v2121
      %v2123 = vpop.f32.mrb[0].mxu0
      %2124 = vmatprep.mubr.f32.mxu0 0.0
      %2125 = vmatmul.mubr.f32.gmra.mrb[0].mxu0 %v1997
      %v2126 = vpop.f32.mrb[0].mxu0
      %v2127 = vadd.f32 %v1934, %v2126
      %v2128 = vpop.f32.mrb[0].mxu0
      %2129 = vmatprep.mubr.f32.mxu0 0.0
      %2130 = vmatmul.mubr.f32.gmra.mrb[0].mxu0 %v2000
      %v2131 = vpop.f32.mrb[0].mxu0
      %v2132 = vadd.f32 %v1939, %v2131
      %v2133 = vpop.f32.mrb[0].mxu0
      %2134 = vmatprep.mubr.f32.mxu0 0.0
      %2135 = vmatmul.mubr.f32.gmra.mrb[0].mxu0 %v2003
      %v2136 = vpop.f32.mrb[0].mxu0
      %v2137 = vadd.f32 %v1944, %v2136
      %v2138 = vpop.f32.mrb[0].mxu0
      %2139 = vmatprep.mubr.f32.mxu0 0.0
      %2140 = vmatmul.mubr.f32.gmra.mrb[0].mxu0 %v2006
      %v2141 = vpop.f32.mrb[0].mxu0
      %v2142 = vadd.f32 %v1949, %v2141
      %v2143 = vpop.f32.mrb[0].mxu0
      %2144 = vmatprep.mubr.f32.mxu0 0.0
      %2145 = vmatmul.mubr.f32.gmra.mrb[0].mxu0 %v2009
      %v2146 = vpop.f32.mrb[0].mxu0
      %v2147 = vadd.f32 %v1954, %v2146
      %v2148 = vpop.f32.mrb[0].mxu0
      %2149 = vmatprep.mubr.f32.mxu0 0.0
      %2150 = vmatmul.mubr.f32.gmra.mrb[0].mxu0 %v2012
      %v2151 = vpop.f32.mrb[0].mxu0
      %v2152 = vadd.f32 %v1959, %v2151
      %v2153 = vpop.f32.mrb[0].mxu0
      %2154 = vmatprep.mubr.f32.mxu0 0.0
      %2155 = vmatmul.mubr.f32.gmra.mrb[0].mxu0 %v2015
      %v2156 = vpop.f32.mrb[0].mxu0
      %v2157 = vadd.f32 %v1964, %v2156
      %v2158 = vpop.f32.mrb[0].mxu0
      %2159 = vmatprep.mubr.f32.mxu0 0.0
      %2160 = vmatmul.mubr.f32.gmra.mrb[0].mxu0 %v2018
      %v2161 = vpop.f32.mrb[0].mxu0
      %v2162 = vadd.f32 %v1969, %v2161
      %v2163 = vpop.f32.mrb[0].mxu0
      %2164 = vdwg.mxu0
      %v2165 = vld [vmem:[%s6] sm:$0xff]
      %v2166 = vld [vmem:[%s6 + $0x8] sm:$0xff]
      %v2167 = vld [vmem:[%s6 + $0x10] sm:$0xff]
      %v2168 = vld [vmem:[%s6 + $0x18] sm:$0xff]
      %v2169 = vld [vmem:[%s6 + $0x20] sm:$0xff]
      %v2170 = vld [vmem:[%s6 + $0x28] sm:$0xff]
      %v2171 = vld [vmem:[%s6 + $0x30] sm:$0xff]
      %v2172 = vld [vmem:[%s6 + $0x38] sm:$0xff]
      %v2173 = vld [vmem:[%s6 + $0x40] sm:$0xff]
      %v2174 = vld [vmem:[%s6 + $0x48] sm:$0xff]
      %v2175 = vld [vmem:[%s6 + $0x50] sm:$0xff]
      %v2176 = vld [vmem:[%s6 + $0x58] sm:$0xff]
      %v2177 = vld [vmem:[%s6 + $0x60] sm:$0xff]
      %v2178 = vld [vmem:[%s6 + $0x68] sm:$0xff]
      %v2179 = vld [vmem:[%s6 + $0x70] sm:$0xff]
      %v2180 = vld [vmem:[%s6 + $0x78] sm:$0xff]
      %vm2309 = vcmask 1041409
      %v2310 = vsel %vm2309, %v847, %v840
      %vm2311 = vcmask 1042434
      %v2312 = vsel %vm2311, %v854, %v2310
      %vm2313 = vcmask 1043459
      %v2314 = vsel %vm2313, %v861, %v2312
      %vm2315 = vcmask 1044484
      %v2316 = vsel %vm2315, %v868, %v2314
      %vm2317 = vcmask 1045509
      %v2318 = vsel %vm2317, %v875, %v2316
      %vm2319 = vcmask 1046534
      %v2320 = vsel %vm2319, %v882, %v2318
      %vm2321 = vcmask 1047559
      %v2322 = vsel %vm2321, %v889, %v2320
      %v2323 = vsel %vm2309, %v903, %v896
      %v2324 = vsel %vm2311, %v910, %v2323
      %v2325 = vsel %vm2313, %v917, %v2324
      %v2326 = vsel %vm2315, %v924, %v2325
      %v2327 = vsel %vm2317, %v931, %v2326
      %v2328 = vsel %vm2319, %v938, %v2327
      %v2329 = vsel %vm2321, %v945, %v2328
      %v2330 = vsel %vm2309, %v959, %v952
      %v2331 = vsel %vm2311, %v966, %v2330
      %v2332 = vsel %vm2313, %v973, %v2331
      %v2333 = vsel %vm2315, %v980, %v2332
      %v2334 = vsel %vm2317, %v987, %v2333
      %v2335 = vsel %vm2319, %v994, %v2334
      %v2336 = vsel %vm2321, %v1001, %v2335
      %v2337 = vsel %vm2309, %v1015, %v1008
      %v2338 = vsel %vm2311, %v1022, %v2337
      %v2339 = vsel %vm2313, %v1029, %v2338
      %v2340 = vsel %vm2315, %v1036, %v2339
      %v2341 = vsel %vm2317, %v1043, %v2340
      %v2342 = vsel %vm2319, %v1050, %v2341
      %v2343 = vsel %vm2321, %v1057, %v2342
      %v2344 = vsel %vm2309, %v1071, %v1064
      %v2345 = vsel %vm2311, %v1078, %v2344
      %v2346 = vsel %vm2313, %v1085, %v2345
      %v2347 = vsel %vm2315, %v1092, %v2346
      %v2348 = vsel %vm2317, %v1099, %v2347
      %v2349 = vsel %vm2319, %v1106, %v2348
      %v2350 = vsel %vm2321, %v1113, %v2349
      %v2351 = vsel %vm2309, %v1127, %v1120
      %v2352 = vsel %vm2311, %v1134, %v2351
      %v2353 = vsel %vm2313, %v1141, %v2352
      %v2354 = vsel %vm2315, %v1148, %v2353
      %v2355 = vsel %vm2317, %v1155, %v2354
      %v2356 = vsel %vm2319, %v1162, %v2355
      %v2357 = vsel %vm2321, %v1169, %v2356
      %v2358 = vsel %vm2309, %v1183, %v1176
      %v2359 = vsel %vm2311, %v1190, %v2358
      %v2360 = vsel %vm2313, %v1197, %v2359
      %v2361 = vsel %vm2315, %v1204, %v2360
      %v2362 = vsel %vm2317, %v1211, %v2361
      %v2363 = vsel %vm2319, %v1218, %v2362
      %v2364 = vsel %vm2321, %v1225, %v2363
      %v2365 = vsel %vm2309, %v1239, %v1232
      %v2366 = vsel %vm2311, %v1246, %v2365
      %v2367 = vsel %vm2313, %v1253, %v2366
      %v2368 = vsel %vm2315, %v1260, %v2367
      %v2369 = vsel %vm2317, %v1267, %v2368
      %v2370 = vsel %vm2319, %v1274, %v2369
      %v2371 = vsel %vm2321, %v1281, %v2370
      %v2372 = vsel %vm2309, %v1295, %v1288
      %v2373 = vsel %vm2311, %v1302, %v2372
      %v2374 = vsel %vm2313, %v1309, %v2373
      %v2375 = vsel %vm2315, %v1316, %v2374
      %v2376 = vsel %vm2317, %v1323, %v2375
      %v2377 = vsel %vm2319, %v1330, %v2376
      %v2378 = vsel %vm2321, %v1337, %v2377
      %v2379 = vsel %vm2309, %v1351, %v1344
      %v2380 = vsel %vm2311, %v1358, %v2379
      %v2381 = vsel %vm2313, %v1365, %v2380
      %v2382 = vsel %vm2315, %v1372, %v2381
      %v2383 = vsel %vm2317, %v1379, %v2382
      %v2384 = vsel %vm2319, %v1386, %v2383
      %v2385 = vsel %vm2321, %v1393, %v2384
      %v2386 = vsel %vm2309, %v1407, %v1400
      %v2387 = vsel %vm2311, %v1414, %v2386
      %v2388 = vsel %vm2313, %v1421, %v2387
      %v2389 = vsel %vm2315, %v1428, %v2388
      %v2390 = vsel %vm2317, %v1435, %v2389
      %v2391 = vsel %vm2319, %v1442, %v2390
      %v2392 = vsel %vm2321, %v1449, %v2391
      %v2393 = vsel %vm2309, %v1463, %v1456
      %v2394 = vsel %vm2311, %v1470, %v2393
      %v2395 = vsel %vm2313, %v1477, %v2394
      %v2396 = vsel %vm2315, %v1484, %v2395
      %v2397 = vsel %vm2317, %v1491, %v2396
      %v2398 = vsel %vm2319, %v1498, %v2397
      %v2399 = vsel %vm2321, %v1505, %v2398
      %v2400 = vsel %vm2309, %v1519, %v1512
      %v2401 = vsel %vm2311, %v1526, %v2400
      %v2402 = vsel %vm2313, %v1533, %v2401
      %v2403 = vsel %vm2315, %v1540, %v2402
      %v2404 = vsel %vm2317, %v1547, %v2403
      %v2405 = vsel %vm2319, %v1554, %v2404
      %v2406 = vsel %vm2321, %v1561, %v2405
      %v2407 = vsel %vm2309, %v1575, %v1568
      %v2408 = vsel %vm2311, %v1582, %v2407
      %v2409 = vsel %vm2313, %v1589, %v2408
      %v2410 = vsel %vm2315, %v1596, %v2409
      %v2411 = vsel %vm2317, %v1603, %v2410
      %v2412 = vsel %vm2319, %v1610, %v2411
      %v2413 = vsel %vm2321, %v1617, %v2412
      %v2414 = vsel %vm2309, %v1631, %v1624
      %v2415 = vsel %vm2311, %v1638, %v2414
      %v2416 = vsel %vm2313, %v1645, %v2415
      %v2417 = vsel %vm2315, %v1652, %v2416
      %v2418 = vsel %vm2317, %v1659, %v2417
      %v2419 = vsel %vm2319, %v1666, %v2418
      %v2420 = vsel %vm2321, %v1673, %v2419
      %v2421 = vsel %vm2309, %v1687, %v1680
      %v2422 = vsel %vm2311, %v1694, %v2421
      %v2423 = vsel %vm2313, %v1701, %v2422
      %v2424 = vsel %vm2315, %v1708, %v2423
      %v2425 = vsel %vm2317, %v1715, %v2424
      %v2426 = vsel %vm2319, %v1722, %v2425
      %v2427 = vsel %vm2321, %v1729, %v2426
      %2444 = vmatprep.subr.mxu0 0.0
      %2445 = vmatpush1.msra.mxu0 %v2165
      %2446 = vmatprep.subr.mxu0 0.0
      %2447 = vmatpush1.msra.mxu0 %v2166
      %2448 = vmatprep.subr.mxu0 0.0
      %2449 = vmatpush1.msra.mxu0 %v2167
      %2450 = vmatprep.subr.mxu0 0.0
      %2451 = vmatpush1.msra.mxu0 %v2168
      %2452 = vmatprep.subr.mxu0 0.0
      %2453 = vmatpush1.msra.mxu0 %v2169
      %2454 = vmatprep.subr.mxu0 0.0
      %2455 = vmatpush1.msra.mxu0 %v2170
      %2456 = vmatprep.subr.mxu0 0.0
      %2457 = vmatpush1.msra.mxu0 %v2171
      %2458 = vmatprep.subr.mxu0 0.0
      %2459 = vmatpush1.msra.mxu0 %v2172
      %2460 = vmatprep.subr.mxu0 0.0
      %2461 = vmatpush1.msra.mxu0 %v2173
      %2462 = vmatprep.subr.mxu0 0.0
      %2463 = vmatpush1.msra.mxu0 %v2174
      %2464 = vmatprep.subr.mxu0 0.0
      %2465 = vmatpush1.msra.mxu0 %v2175
      %2466 = vmatprep.subr.mxu0 0.0
      %2467 = vmatpush1.msra.mxu0 %v2176
      %2468 = vmatprep.subr.mxu0 0.0
      %2469 = vmatpush1.msra.mxu0 %v2177
      %2470 = vmatprep.subr.mxu0 0.0
      %2471 = vmatpush1.msra.mxu0 %v2178
      %2472 = vmatprep.subr.mxu0 0.0
      %2473 = vmatpush1.msra.mxu0 %v2179
      %2474 = vmatprep.subr.mxu0 0.0
      %2475 = vmatpush1.msra.mxu0 %v2180
      %2476 = vmatprep.subr.mxu0 0.0
      %2477 = vmatpush1.msra.mxu0 0.0
      %2478 = vmatprep.subr.mxu0 0.0
      %2479 = vmatpush1.msra.mxu0 0.0
      %2480 = vmatprep.subr.mxu0 0.0
      %2481 = vmatpush1.msra.mxu0 0.0
      %2482 = vmatprep.subr.mxu0 0.0
      %2483 = vmatpush1.msra.mxu0 0.0
      %2484 = vmatprep.subr.mxu0 0.0
      %2485 = vmatpush1.msra.mxu0 0.0
      %2486 = vmatprep.subr.mxu0 0.0
      %2487 = vmatpush1.msra.mxu0 0.0
      %2488 = vmatprep.subr.mxu0 0.0
      %2489 = vmatpush1.msra.mxu0 0.0
      %2490 = vmatprep.subr.mxu0 0.0
      %2491 = vmatpush1.msra.mxu0 0.0
      %2492 = vmatprep.subr.mxu0 0.0
      %2493 = vmatpush1.msra.mxu0 0.0
      %2494 = vmatprep.subr.mxu0 0.0
      %2495 = vmatpush1.msra.mxu0 0.0
      %2496 = vmatprep.subr.mxu0 0.0
      %2497 = vmatpush1.msra.mxu0 0.0
      %2498 = vmatprep.subr.mxu0 0.0
      %2499 = vmatpush1.msra.mxu0 0.0
      %2500 = vmatprep.subr.mxu0 0.0
      %2501 = vmatpush1.msra.mxu0 0.0
      %2502 = vmatprep.subr.mxu0 0.0
      %2503 = vmatpush1.msra.mxu0 0.0
      %2504 = vmatprep.subr.mxu0 0.0
      %2505 = vmatpush1.msra.mxu0 0.0
      %2506 = vmatprep.subr.mxu0 0.0
      %2507 = vmatpush1.msra.mxu0 0.0
      %2508 = vmatprep.mubr.f32.mxu0 0.0
      %2509 = vmatmul.mubr.f32.gmra.mrb[0].mxu0 %v2322
      %v2510 = vpop.f32.mrb[0].mxu0
      %v2511 = vadd.f32 0.0, %v2510
      %v2512 = vpop.f32.mrb[0].mxu0
      %2513 = vmatprep.mubr.f32.mxu0 0.0
      %2514 = vmatmul.mubr.f32.gmra.mrb[0].mxu0 %v2329
      %v2515 = vpop.f32.mrb[0].mxu0
      %v2516 = vadd.f32 0.0, %v2515
      %v2517 = vpop.f32.mrb[0].mxu0
      %2518 = vmatprep.mubr.f32.mxu0 0.0
      %2519 = vmatmul.mubr.f32.gmra.mrb[0].mxu0 %v2336
      %v2520 = vpop.f32.mrb[0].mxu0
      %v2521 = vadd.f32 0.0, %v2520
      %v2522 = vpop.f32.mrb[0].mxu0
      %2523 = vmatprep.mubr.f32.mxu0 0.0
      %2524 = vmatmul.mubr.f32.gmra.mrb[0].mxu0 %v2343
      %v2525 = vpop.f32.mrb[0].mxu0
      %v2526 = vadd.f32 0.0, %v2525
      %v2527 = vpop.f32.mrb[0].mxu0
      %2528 = vmatprep.mubr.f32.mxu0 0.0
      %2529 = vmatmul.mubr.f32.gmra.mrb[0].mxu0 %v2350
      %v2530 = vpop.f32.mrb[0].mxu0
      %v2531 = vadd.f32 0.0, %v2530
      %v2532 = vpop.f32.mrb[0].mxu0
      %2533 = vmatprep.mubr.f32.mxu0 0.0
      %2534 = vmatmul.mubr.f32.gmra.mrb[0].mxu0 %v2357
      %v2535 = vpop.f32.mrb[0].mxu0
      %v2536 = vadd.f32 0.0, %v2535
      %v2537 = vpop.f32.mrb[0].mxu0
      %2538 = vmatprep.mubr.f32.mxu0 0.0
      %2539 = vmatmul.mubr.f32.gmra.mrb[0].mxu0 %v2364
      %v2540 = vpop.f32.mrb[0].mxu0
      %v2541 = vadd.f32 0.0, %v2540
      %v2542 = vpop.f32.mrb[0].mxu0
      %2543 = vmatprep.mubr.f32.mxu0 0.0
      %2544 = vmatmul.mubr.f32.gmra.mrb[0].mxu0 %v2371
      %v2545 = vpop.f32.mrb[0].mxu0
      %v2546 = vadd.f32 0.0, %v2545
      %v2547 = vpop.f32.mrb[0].mxu0
      %2548 = vmatprep.mubr.f32.mxu0 0.0
      %2549 = vmatmul.mubr.f32.gmra.mrb[0].mxu0 %v2378
      %v2550 = vpop.f32.mrb[0].mxu0
      %v2551 = vadd.f32 0.0, %v2550
      %v2552 = vpop.f32.mrb[0].mxu0
      %2553 = vmatprep.mubr.f32.mxu0 0.0
      %2554 = vmatmul.mubr.f32.gmra.mrb[0].mxu0 %v2385
      %v2555 = vpop.f32.mrb[0].mxu0
      %v2556 = vadd.f32 0.0, %v2555
      %v2557 = vpop.f32.mrb[0].mxu0
      %2558 = vmatprep.mubr.f32.mxu0 0.0
      %2559 = vmatmul.mubr.f32.gmra.mrb[0].mxu0 %v2392
      %v2560 = vpop.f32.mrb[0].mxu0
      %v2561 = vadd.f32 0.0, %v2560
      %v2562 = vpop.f32.mrb[0].mxu0
      %2563 = vmatprep.mubr.f32.mxu0 0.0
      %2564 = vmatmul.mubr.f32.gmra.mrb[0].mxu0 %v2399
      %v2565 = vpop.f32.mrb[0].mxu0
      %v2566 = vadd.f32 0.0, %v2565
      %v2567 = vpop.f32.mrb[0].mxu0
      %2568 = vmatprep.mubr.f32.mxu0 0.0
      %2569 = vmatmul.mubr.f32.gmra.mrb[0].mxu0 %v2406
      %v2570 = vpop.f32.mrb[0].mxu0
      %v2571 = vadd.f32 0.0, %v2570
      %v2572 = vpop.f32.mrb[0].mxu0
      %2573 = vmatprep.mubr.f32.mxu0 0.0
      %2574 = vmatmul.mubr.f32.gmra.mrb[0].mxu0 %v2413
      %v2575 = vpop.f32.mrb[0].mxu0
      %v2576 = vadd.f32 0.0, %v2575
      %v2577 = vpop.f32.mrb[0].mxu0
      %2578 = vmatprep.mubr.f32.mxu0 0.0
      %2579 = vmatmul.mubr.f32.gmra.mrb[0].mxu0 %v2420
      %v2580 = vpop.f32.mrb[0].mxu0
      %v2581 = vadd.f32 0.0, %v2580
      %v2582 = vpop.f32.mrb[0].mxu0
      %2583 = vmatprep.mubr.f32.mxu0 0.0
      %2584 = vmatmul.mubr.f32.gmra.mrb[0].mxu0 %v2427
      %v2585 = vpop.f32.mrb[0].mxu0
      %v2586 = vadd.f32 0.0, %v2585
      %v2587 = vpop.f32.mrb[0].mxu0
      %2588 = vdwg.mxu0
      %v2589 = vadd.f32 %v2087, %v2511
      %v2590 = vadd.f32 %v2092, %v2516
      %v2591 = vadd.f32 %v2097, %v2521
      %v2592 = vadd.f32 %v2102, %v2526
      %v2593 = vadd.f32 %v2107, %v2531
      %v2594 = vadd.f32 %v2112, %v2536
      %v2595 = vadd.f32 %v2117, %v2541
      %v2596 = vadd.f32 %v2122, %v2546
      %v2597 = vadd.f32 %v2127, %v2551
      %v2598 = vadd.f32 %v2132, %v2556
      %v2599 = vadd.f32 %v2137, %v2561
      %v2600 = vadd.f32 %v2142, %v2566
      %v2601 = vadd.f32 %v2147, %v2571
      %v2602 = vadd.f32 %v2152, %v2576
      %v2603 = vadd.f32 %v2157, %v2581
      %v2604 = vadd.f32 %v2162, %v2586
      %v2605 = vld [vmem:[%s7] sm:$0x1]
      %v2607 = vlaneseq
      %v2608 = vshrl.u32 %v2607, 7
      %v2609 = vsub.s32 0, %v2608
      %v2610 = vrot.slane %v2605, %v2609
      %v2612 = vadd.f32 %v2589, %v2610
      %v2613 = vadd.f32 %v2590, %v2610
      %v2614 = vadd.f32 %v2591, %v2610
      %v2615 = vadd.f32 %v2592, %v2610
      %v2616 = vadd.f32 %v2593, %v2610
      %v2617 = vadd.f32 %v2594, %v2610
      %v2618 = vadd.f32 %v2595, %v2610
      %v2619 = vadd.f32 %v2596, %v2610
      %v2620 = vadd.f32 %v2597, %v2610
      %v2621 = vadd.f32 %v2598, %v2610
      %v2622 = vadd.f32 %v2599, %v2610
      %v2623 = vadd.f32 %v2600, %v2610
      %v2624 = vadd.f32 %v2601, %v2610
      %v2625 = vadd.f32 %v2602, %v2610
      %v2626 = vadd.f32 %v2603, %v2610
      %v2627 = vadd.f32 %v2604, %v2610
      %v2628 = vmax.f32 %v2612, 0.0
      %v2629 = vmax.f32 %v2613, 0.0
      %v2630 = vmax.f32 %v2614, 0.0
      %v2631 = vmax.f32 %v2615, 0.0
      %v2632 = vmax.f32 %v2616, 0.0
      %v2633 = vmax.f32 %v2617, 0.0
      %v2634 = vmax.f32 %v2618, 0.0
      %v2635 = vmax.f32 %v2619, 0.0
      %v2636 = vmax.f32 %v2620, 0.0
      %v2637 = vmax.f32 %v2621, 0.0
      %v2638 = vmax.f32 %v2622, 0.0
      %v2639 = vmax.f32 %v2623, 0.0
      %v2640 = vmax.f32 %v2624, 0.0
      %v2641 = vmax.f32 %v2625, 0.0
      %v2642 = vmax.f32 %v2626, 0.0
      %v2643 = vmax.f32 %v2627, 0.0
      %v2644 = vld [vmem:[%s8] sm:$0x1]
      %v2646 = vlaneseq
      %v2647 = vshrl.u32 %v2646, 7
      %v2648 = vsub.s32 0, %v2647
      %v2649 = vrot.slane %v2644, %v2648
      %v2651 = vmul.f32 %v2628, %v2649
      %v2652 = vmul.f32 %v2629, %v2649
      %v2653 = vmul.f32 %v2630, %v2649
      %v2654 = vmul.f32 %v2631, %v2649
      %v2655 = vmul.f32 %v2632, %v2649
      %v2656 = vmul.f32 %v2633, %v2649
      %v2657 = vmul.f32 %v2634, %v2649
      %v2658 = vmul.f32 %v2635, %v2649
      %v2659 = vmul.f32 %v2636, %v2649
      %v2660 = vmul.f32 %v2637, %v2649
      %v2661 = vmul.f32 %v2638, %v2649
      %v2662 = vmul.f32 %v2639, %v2649
      %v2663 = vmul.f32 %v2640, %v2649
      %v2664 = vmul.f32 %v2641, %v2649
      %v2665 = vmul.f32 %v2642, %v2649
      %v2666 = vmul.f32 %v2643, %v2649
      %v2667 = vld [vmem:[%s9] sm:$0x1]
      %v2669 = vlaneseq
      %v2670 = vshrl.u32 %v2669, 7
      %v2671 = vsub.s32 0, %v2670
      %v2672 = vrot.slane %v2667, %v2671
      %v2674 = vadd.f32 %v2651, %v2672
      %v2675 = vadd.f32 %v2652, %v2672
      %v2676 = vadd.f32 %v2653, %v2672
      %v2677 = vadd.f32 %v2654, %v2672
      %v2678 = vadd.f32 %v2655, %v2672
      %v2679 = vadd.f32 %v2656, %v2672
      %v2680 = vadd.f32 %v2657, %v2672
      %v2681 = vadd.f32 %v2658, %v2672
      %v2682 = vadd.f32 %v2659, %v2672
      %v2683 = vadd.f32 %v2660, %v2672
      %v2684 = vadd.f32 %v2661, %v2672
      %v2685 = vadd.f32 %v2662, %v2672
      %v2686 = vadd.f32 %v2663, %v2672
      %v2687 = vadd.f32 %v2664, %v2672
      %v2688 = vadd.f32 %v2665, %v2672
      %v2689 = vadd.f32 %v2666, %v2672
      %v2690 = vld [vmem:[%s10] sm:$0xff]
      %v2691 = vld [vmem:[%s10 + $0x8] sm:$0xff]
      %v2692 = vld [vmem:[%s10 + $0x10] sm:$0xff]
      %v2693 = vld [vmem:[%s10 + $0x18] sm:$0xff]
      %v2694 = vld [vmem:[%s10 + $0x20] sm:$0xff]
      %v2695 = vld [vmem:[%s10 + $0x28] sm:$0xff]
      %v2696 = vld [vmem:[%s10 + $0x30] sm:$0xff]
      %v2697 = vld [vmem:[%s10 + $0x38] sm:$0xff]
      %v2698 = vld [vmem:[%s10 + $0x40] sm:$0xff]
      %v2699 = vld [vmem:[%s10 + $0x48] sm:$0xff]
      %v2700 = vld [vmem:[%s10 + $0x50] sm:$0xff]
      %v2701 = vld [vmem:[%s10 + $0x58] sm:$0xff]
      %v2702 = vld [vmem:[%s10 + $0x60] sm:$0xff]
      %v2703 = vld [vmem:[%s10 + $0x68] sm:$0xff]
      %v2704 = vld [vmem:[%s10 + $0x70] sm:$0xff]
      %v2705 = vld [vmem:[%s10 + $0x78] sm:$0xff]
      %v2706 = vld [vmem:[%s11] sm:$0x1]
      %v2708 = vlaneseq
      %v2709 = vshrl.u32 %v2708, 7
      %v2710 = vsub.s32 0, %v2709
      %v2711 = vrot.slane %v2706, %v2710
      %2713 = vmatprep.subr.mxu0 0.0
      %2714 = vmatpush1.msra.mxu0 %v2690
      %2715 = vmatprep.subr.mxu0 0.0
      %2716 = vmatpush1.msra.mxu0 %v2691
      %2717 = vmatprep.subr.mxu0 0.0
      %2718 = vmatpush1.msra.mxu0 %v2692
      %2719 = vmatprep.subr.mxu0 0.0
      %2720 = vmatpush1.msra.mxu0 %v2693
      %2721 = vmatprep.subr.mxu0 0.0
      %2722 = vmatpush1.msra.mxu0 %v2694
      %2723 = vmatprep.subr.mxu0 0.0
      %2724 = vmatpush1.msra.mxu0 %v2695
      %2725 = vmatprep.subr.mxu0 0.0
      %2726 = vmatpush1.msra.mxu0 %v2696
      %2727 = vmatprep.subr.mxu0 0.0
      %2728 = vmatpush1.msra.mxu0 %v2697
      %2729 = vmatprep.subr.mxu0 0.0
      %2730 = vmatpush1.msra.mxu0 %v2698
      %2731 = vmatprep.subr.mxu0 0.0
      %2732 = vmatpush1.msra.mxu0 %v2699
      %2733 = vmatprep.subr.mxu0 0.0
      %2734 = vmatpush1.msra.mxu0 %v2700
      %2735 = vmatprep.subr.mxu0 0.0
      %2736 = vmatpush1.msra.mxu0 %v2701
      %2737 = vmatprep.subr.mxu0 0.0
      %2738 = vmatpush1.msra.mxu0 %v2702
      %2739 = vmatprep.subr.mxu0 0.0
      %2740 = vmatpush1.msra.mxu0 %v2703
      %2741 = vmatprep.subr.mxu0 0.0
      %2742 = vmatpush1.msra.mxu0 %v2704
      %2743 = vmatprep.subr.mxu0 0.0
      %2744 = vmatpush1.msra.mxu0 %v2705
      %2745 = vmatprep.subr.mxu0 0.0
      %2746 = vmatpush1.msra.mxu0 0.0
      %2747 = vmatprep.subr.mxu0 0.0
      %2748 = vmatpush1.msra.mxu0 0.0
      %2749 = vmatprep.subr.mxu0 0.0
      %2750 = vmatpush1.msra.mxu0 0.0
      %2751 = vmatprep.subr.mxu0 0.0
      %2752 = vmatpush1.msra.mxu0 0.0
      %2753 = vmatprep.subr.mxu0 0.0
      %2754 = vmatpush1.msra.mxu0 0.0
      %2755 = vmatprep.subr.mxu0 0.0
      %2756 = vmatpush1.msra.mxu0 0.0
      %2757 = vmatprep.subr.mxu0 0.0
      %2758 = vmatpush1.msra.mxu0 0.0
      %2759 = vmatprep.subr.mxu0 0.0
      %2760 = vmatpush1.msra.mxu0 0.0
      %2761 = vmatprep.subr.mxu0 0.0
      %2762 = vmatpush1.msra.mxu0 0.0
      %2763 = vmatprep.subr.mxu0 0.0
      %2764 = vmatpush1.msra.mxu0 0.0
      %2765 = vmatprep.subr.mxu0 0.0
      %2766 = vmatpush1.msra.mxu0 0.0
      %2767 = vmatprep.subr.mxu0 0.0
      %2768 = vmatpush1.msra.mxu0 0.0
      %2769 = vmatprep.subr.mxu0 0.0
      %2770 = vmatpush1.msra.mxu0 0.0
      %2771 = vmatprep.subr.mxu0 0.0
      %2772 = vmatpush1.msra.mxu0 0.0
      %2773 = vmatprep.subr.mxu0 0.0
      %2774 = vmatpush1.msra.mxu0 0.0
      %2775 = vmatprep.subr.mxu0 0.0
      %2776 = vmatpush1.msra.mxu0 0.0
      %2777 = vmatprep.mubr.f32.mxu0 0.0
      %2778 = vmatmul.mubr.f32.gmra.mrb[0].mxu0 %v2674
      %v2779 = vpop.f32.mrb[0].mxu0
      %v2780 = vadd.f32 %v2711, %v2779
      %v2781 = vpop.f32.mrb[0].mxu0
      %2782 = vmatprep.mubr.f32.mxu0 0.0
      %2783 = vmatmul.mubr.f32.gmra.mrb[0].mxu0 %v2675
      %v2784 = vpop.f32.mrb[0].mxu0
      %v2785 = vadd.f32 %v2711, %v2784
      %v2786 = vpop.f32.mrb[0].mxu0
      %2787 = vmatprep.mubr.f32.mxu0 0.0
      %2788 = vmatmul.mubr.f32.gmra.mrb[0].mxu0 %v2676
      %v2789 = vpop.f32.mrb[0].mxu0
      %v2790 = vadd.f32 %v2711, %v2789
      %v2791 = vpop.f32.mrb[0].mxu0
      %2792 = vmatprep.mubr.f32.mxu0 0.0
      %2793 = vmatmul.mubr.f32.gmra.mrb[0].mxu0 %v2677
      %v2794 = vpop.f32.mrb[0].mxu0
      %v2795 = vadd.f32 %v2711, %v2794
      %v2796 = vpop.f32.mrb[0].mxu0
      %2797 = vmatprep.mubr.f32.mxu0 0.0
      %2798 = vmatmul.mubr.f32.gmra.mrb[0].mxu0 %v2678
      %v2799 = vpop.f32.mrb[0].mxu0
      %v2800 = vadd.f32 %v2711, %v2799
      %v2801 = vpop.f32.mrb[0].mxu0
      %2802 = vmatprep.mubr.f32.mxu0 0.0
      %2803 = vmatmul.mubr.f32.gmra.mrb[0].mxu0 %v2679
      %v2804 = vpop.f32.mrb[0].mxu0
      %v2805 = vadd.f32 %v2711, %v2804
      %v2806 = vpop.f32.mrb[0].mxu0
      %2807 = vmatprep.mubr.f32.mxu0 0.0
      %2808 = vmatmul.mubr.f32.gmra.mrb[0].mxu0 %v2680
      %v2809 = vpop.f32.mrb[0].mxu0
      %v2810 = vadd.f32 %v2711, %v2809
      %v2811 = vpop.f32.mrb[0].mxu0
      %2812 = vmatprep.mubr.f32.mxu0 0.0
      %2813 = vmatmul.mubr.f32.gmra.mrb[0].mxu0 %v2681
      %v2814 = vpop.f32.mrb[0].mxu0
      %v2815 = vadd.f32 %v2711, %v2814
      %v2816 = vpop.f32.mrb[0].mxu0
      %2817 = vmatprep.mubr.f32.mxu0 0.0
      %2818 = vmatmul.mubr.f32.gmra.mrb[0].mxu0 %v2682
      %v2819 = vpop.f32.mrb[0].mxu0
      %v2820 = vadd.f32 %v2711, %v2819
      %v2821 = vpop.f32.mrb[0].mxu0
      %2822 = vmatprep.mubr.f32.mxu0 0.0
      %2823 = vmatmul.mubr.f32.gmra.mrb[0].mxu0 %v2683
      %v2824 = vpop.f32.mrb[0].mxu0
      %v2825 = vadd.f32 %v2711, %v2824
      %v2826 = vpop.f32.mrb[0].mxu0
      %2827 = vmatprep.mubr.f32.mxu0 0.0
      %2828 = vmatmul.mubr.f32.gmra.mrb[0].mxu0 %v2684
      %v2829 = vpop.f32.mrb[0].mxu0
      %v2830 = vadd.f32 %v2711, %v2829
      %v2831 = vpop.f32.mrb[0].mxu0
      %2832 = vmatprep.mubr.f32.mxu0 0.0
      %2833 = vmatmul.mubr.f32.gmra.mrb[0].mxu0 %v2685
      %v2834 = vpop.f32.mrb[0].mxu0
      %v2835 = vadd.f32 %v2711, %v2834
      %v2836 = vpop.f32.mrb[0].mxu0
      %2837 = vmatprep.mubr.f32.mxu0 0.0
      %2838 = vmatmul.mubr.f32.gmra.mrb[0].mxu0 %v2686
      %v2839 = vpop.f32.mrb[0].mxu0
      %v2840 = vadd.f32 %v2711, %v2839
      %v2841 = vpop.f32.mrb[0].mxu0
      %2842 = vmatprep.mubr.f32.mxu0 0.0
      %2843 = vmatmul.mubr.f32.gmra.mrb[0].mxu0 %v2687
      %v2844 = vpop.f32.mrb[0].mxu0
      %v2845 = vadd.f32 %v2711, %v2844
      %v2846 = vpop.f32.mrb[0].mxu0
      %2847 = vmatprep.mubr.f32.mxu0 0.0
      %2848 = vmatmul.mubr.f32.gmra.mrb[0].mxu0 %v2688
      %v2849 = vpop.f32.mrb[0].mxu0
      %v2850 = vadd.f32 %v2711, %v2849
      %v2851 = vpop.f32.mrb[0].mxu0
      %2852 = vmatprep.mubr.f32.mxu0 0.0
      %2853 = vmatmul.mubr.f32.gmra.mrb[0].mxu0 %v2689
      %v2854 = vpop.f32.mrb[0].mxu0
      %v2855 = vadd.f32 %v2711, %v2854
      %v2856 = vpop.f32.mrb[0].mxu0
      %2857 = vdwg.mxu0
      %v2858 = vmax.f32 %v2780, 0.0
      %v2859 = vmax.f32 %v2785, 0.0
      %v2860 = vmax.f32 %v2790, 0.0
      %v2861 = vmax.f32 %v2795, 0.0
      %v2862 = vmax.f32 %v2800, 0.0
      %v2863 = vmax.f32 %v2805, 0.0
      %v2864 = vmax.f32 %v2810, 0.0
      %v2865 = vmax.f32 %v2815, 0.0
      %v2866 = vmax.f32 %v2820, 0.0
      %v2867 = vmax.f32 %v2825, 0.0
      %v2868 = vmax.f32 %v2830, 0.0
      %v2869 = vmax.f32 %v2835, 0.0
      %v2870 = vmax.f32 %v2840, 0.0
      %v2871 = vmax.f32 %v2845, 0.0
      %v2872 = vmax.f32 %v2850, 0.0
      %v2873 = vmax.f32 %v2855, 0.0
      %v2874 = vld [vmem:[%s12] sm:$0x1]
      %v2876 = vlaneseq
      %v2877 = vshrl.u32 %v2876, 7
      %v2878 = vsub.s32 0, %v2877
      %v2879 = vrot.slane %v2874, %v2878
      %v2881 = vmul.f32 %v2858, %v2879
      %v2882 = vmul.f32 %v2859, %v2879
      %v2883 = vmul.f32 %v2860, %v2879
      %v2884 = vmul.f32 %v2861, %v2879
      %v2885 = vmul.f32 %v2862, %v2879
      %v2886 = vmul.f32 %v2863, %v2879
      %v2887 = vmul.f32 %v2864, %v2879
      %v2888 = vmul.f32 %v2865, %v2879
      %v2889 = vmul.f32 %v2866, %v2879
      %v2890 = vmul.f32 %v2867, %v2879
      %v2891 = vmul.f32 %v2868, %v2879
      %v2892 = vmul.f32 %v2869, %v2879
      %v2893 = vmul.f32 %v2870, %v2879
      %v2894 = vmul.f32 %v2871, %v2879
      %v2895 = vmul.f32 %v2872, %v2879
      %v2896 = vmul.f32 %v2873, %v2879
      %v2897 = vld [vmem:[%s13] sm:$0x1]
      %v2899 = vlaneseq
      %v2900 = vshrl.u32 %v2899, 7
      %v2901 = vsub.s32 0, %v2900
      %v2902 = vrot.slane %v2897, %v2901
      %v2904 = vadd.f32 %v2881, %v2902
      %v2905 = vadd.f32 %v2882, %v2902
      %v2906 = vadd.f32 %v2883, %v2902
      %v2907 = vadd.f32 %v2884, %v2902
      %v2908 = vadd.f32 %v2885, %v2902
      %v2909 = vadd.f32 %v2886, %v2902
      %v2910 = vadd.f32 %v2887, %v2902
      %v2911 = vadd.f32 %v2888, %v2902
      %v2912 = vadd.f32 %v2889, %v2902
      %v2913 = vadd.f32 %v2890, %v2902
      %v2914 = vadd.f32 %v2891, %v2902
      %v2915 = vadd.f32 %v2892, %v2902
      %v2916 = vadd.f32 %v2893, %v2902
      %v2917 = vadd.f32 %v2894, %v2902
      %v2918 = vadd.f32 %v2895, %v2902
      %v2919 = vadd.f32 %v2896, %v2902
      %v2920 = vld [vmem:[%s14] sm:$0x1]
      %v2922 = vlaneseq
      %v2923 = vshrl.u32 %v2922, 7
      %v2924 = vsub.s32 0, %v2923
      %v2925 = vrot.slane %v2920, %v2924
      %v2927 = vmul.f32 %v2904, %v2925
      %v2928 = vmul.f32 %v2905, %v2925
      %v2929 = vmul.f32 %v2906, %v2925
      %v2930 = vmul.f32 %v2907, %v2925
      %v2931 = vmul.f32 %v2908, %v2925
      %v2932 = vmul.f32 %v2909, %v2925
      %v2933 = vmul.f32 %v2910, %v2925
      %v2934 = vmul.f32 %v2911, %v2925
      %v2935 = vmul.f32 %v2912, %v2925
      %v2936 = vmul.f32 %v2913, %v2925
      %v2937 = vmul.f32 %v2914, %v2925
      %v2938 = vmul.f32 %v2915, %v2925
      %v2939 = vmul.f32 %v2916, %v2925
      %v2940 = vmul.f32 %v2917, %v2925
      %v2941 = vmul.f32 %v2918, %v2925
      %v2942 = vmul.f32 %v2919, %v2925
      %v2943 = vsel %vm1778, %v2927, 0.0
      %2944 = vadd.xlane.f32.xlu0 %v2943
      %v2945 = vpop.xlane.xlu0 %2944
      %v2946 = vsel %vm1778, %v2928, 0.0
      %2947 = vadd.xlane.f32.xlu0 %v2946
      %v2948 = vpop.xlane.xlu0 %2947
      %v2949 = vsel %vm1778, %v2929, 0.0
      %2950 = vadd.xlane.f32.xlu0 %v2949
      %v2951 = vpop.xlane.xlu0 %2950
      %v2952 = vsel %vm1778, %v2930, 0.0
      %2953 = vadd.xlane.f32.xlu0 %v2952
      %v2954 = vpop.xlane.xlu0 %2953
      %v2955 = vsel %vm1778, %v2931, 0.0
      %2956 = vadd.xlane.f32.xlu0 %v2955
      %v2957 = vpop.xlane.xlu0 %2956
      %v2958 = vsel %vm1778, %v2932, 0.0
      %2959 = vadd.xlane.f32.xlu0 %v2958
      %v2960 = vpop.xlane.xlu0 %2959
      %v2961 = vsel %vm1778, %v2933, 0.0
      %2962 = vadd.xlane.f32.xlu0 %v2961
      %v2963 = vpop.xlane.xlu0 %2962
      %v2964 = vsel %vm1778, %v2934, 0.0
      %2965 = vadd.xlane.f32.xlu0 %v2964
      %v2966 = vpop.xlane.xlu0 %2965
      %v2967 = vsel %vm1778, %v2935, 0.0
      %2968 = vadd.xlane.f32.xlu0 %v2967
      %v2969 = vpop.xlane.xlu0 %2968
      %v2970 = vsel %vm1778, %v2936, 0.0
      %2971 = vadd.xlane.f32.xlu0 %v2970
      %v2972 = vpop.xlane.xlu0 %2971
      %v2973 = vsel %vm1778, %v2937, 0.0
      %2974 = vadd.xlane.f32.xlu0 %v2973
      %v2975 = vpop.xlane.xlu0 %2974
      %v2976 = vsel %vm1778, %v2938, 0.0
      %2977 = vadd.xlane.f32.xlu0 %v2976
      %v2978 = vpop.xlane.xlu0 %2977
      %v2979 = vsel %vm1778, %v2939, 0.0
      %2980 = vadd.xlane.f32.xlu0 %v2979
      %v2981 = vpop.xlane.xlu0 %2980
      %v2982 = vsel %vm1778, %v2940, 0.0
      %2983 = vadd.xlane.f32.xlu0 %v2982
      %v2984 = vpop.xlane.xlu0 %2983
      %v2985 = vsel %vm1778, %v2941, 0.0
      %2986 = vadd.xlane.f32.xlu0 %v2985
      %v2987 = vpop.xlane.xlu0 %2986
      %v2988 = vsel %vm1778, %v2942, 0.0
      %2989 = vadd.xlane.f32.xlu0 %v2988
      %v2990 = vpop.xlane.xlu0 %2989
      %v2991 = vld [vmem:[#allocation2] sm:$0x1]
      %v2993 = vlaneseq
      %v2994 = vshrl.u32 %v2993, 7
      %v2995 = vsub.s32 0, %v2994
      %v2996 = vrot.slane %v2991, %v2995
      %v2998 = vadd.f32 %v2945, %v2996
      %v2999 = vadd.f32 %v2948, %v2996
      %v3000 = vadd.f32 %v2951, %v2996
      %v3001 = vadd.f32 %v2954, %v2996
      %v3002 = vadd.f32 %v2957, %v2996
      %v3003 = vadd.f32 %v2960, %v2996
      %v3004 = vadd.f32 %v2963, %v2996
      %v3005 = vadd.f32 %v2966, %v2996
      %v3006 = vadd.f32 %v2969, %v2996
      %v3007 = vadd.f32 %v2972, %v2996
      %v3008 = vadd.f32 %v2975, %v2996
      %v3009 = vadd.f32 %v2978, %v2996
      %v3010 = vadd.f32 %v2981, %v2996
      %v3011 = vadd.f32 %v2984, %v2996
      %v3012 = vadd.f32 %v2987, %v2996
      %v3013 = vadd.f32 %v2990, %v2996
      %vm3014 = vcmask 7168
      %3015 = vst.msk [vmem:[%s569] sm:$0xff] %vm3014, %v2998
      %3016 = vst.msk [vmem:[%s569 + $0x8] sm:$0xff] %vm3014, %v2999
      %3017 = vst.msk [vmem:[%s569 + $0x10] sm:$0xff] %vm3014, %v3000
      %3018 = vst.msk [vmem:[%s569 + $0x18] sm:$0xff] %vm3014, %v3001
      %3019 = vst.msk [vmem:[%s569 + $0x20] sm:$0xff] %vm3014, %v3002
      %3020 = vst.msk [vmem:[%s569 + $0x28] sm:$0xff] %vm3014, %v3003
      %3021 = vst.msk [vmem:[%s569 + $0x30] sm:$0xff] %vm3014, %v3004
      %3022 = vst.msk [vmem:[%s569 + $0x38] sm:$0xff] %vm3014, %v3005
      %3023 = vst.msk [vmem:[%s569 + $0x40] sm:$0xff] %vm3014, %v3006
      %3024 = vst.msk [vmem:[%s569 + $0x48] sm:$0xff] %vm3014, %v3007
      %3025 = vst.msk [vmem:[%s569 + $0x50] sm:$0xff] %vm3014, %v3008
      %3026 = vst.msk [vmem:[%s569 + $0x58] sm:$0xff] %vm3014, %v3009
      %3027 = vst.msk [vmem:[%s569 + $0x60] sm:$0xff] %vm3014, %v3010
      %3028 = vst.msk [vmem:[%s569 + $0x68] sm:$0xff] %vm3014, %v3011
      %3029 = vst.msk [vmem:[%s569 + $0x70] sm:$0xff] %vm3014, %v3012
      %3030 = vst.msk [vmem:[%s569 + $0x78] sm:$0xff] %vm3014, %v3013
      %s3031 = smul.u32 16, %s29
      %p3032 = scmp.lt.s32.totalorder %s3031, 31
      %s3033 = scalar_select %p3032, %s3031, 31
      %s3034 = smul.addr %s3033, 8
      %s3035 = scalar_lea.vmem %s16, %s3034
      // Predicated region
      $region85: #{stack_linear_dnn_forward.1} parent=83 // pred_check
        %p3036 = pneg %p398
      $region86: #{stack_linear_dnn_forward.1} parent=83 // pred_check_branch
        %3038 = sbr.rel (%p3036) target = $region88
      $region87: #{stack_linear_dnn_forward.1} parent=83 // pred_region
        %s3039 = smul.u32 16, %s29
      $region88: #{stack_linear_dnn_forward.1} parent=83 // pred_fallthru
        _
    $region84: #{stack_linear_dnn_forward.1} parent=5 // pred_fallthru
      _
    %p3040 = scmp.le.s32.totalorder 2, %s24
    // Predicated region
    $region89: #{stack_linear_dnn_forward.1} parent=5 // pred_check
      %p3041 = pneg %p3040
    $region90: #{stack_linear_dnn_forward.1} parent=5 // pred_check_branch
      %3043 = sbr.rel (%p3041) target = $region92
    $region91: #{stack_linear_dnn_forward.1} parent=5 // pred_region
      %s3044 = ssub.s32 %s24, 2
      // Predicated region
      $region93: #{stack_linear_dnn_forward.1} parent=91 // pred_check
        %p3045 = pneg %p404
      $region94: #{stack_linear_dnn_forward.1} parent=91 // pred_check_branch
        %3047 = sbr.rel (%p3045) target = $region96
      $region95: #{stack_linear_dnn_forward.1} parent=91 // pred_region
        %s3048 = smul.u32 16, %s30
        %p3049 = scmp.lt.s32.totalorder %s3048, 31
        %s3050 = scalar_select %p3049, %s3048, 31
        %s3051 = smul.addr %s3050, 8
        %s3052 = scalar_lea.vmem %s16, %s3051
      $region96: #{stack_linear_dnn_forward.1} parent=91 // pred_fallthru
        _
    $region92: #{stack_linear_dnn_forward.1} parent=5 // pred_fallthru
      _
  $region6: #{stack_linear_dnn_forward.1} parent=0 // loop_footer
    %s28 = sadd.s32 1, %s24
  $region7: #{stack_linear_dnn_forward.1} parent=0 // loop_footer_branch
    %23 = sbr.rel target = $region3
  $region8: #{stack_linear_dnn_forward.1} parent=0 // loop_exit
    _

</llo_original>
